<compile_context>
chip_gen: v6e
topology: v6e:2x2x1
jax: 0.10.0
libtpu: 0.0.40
codegen_flags: <defaults>
</compile_context>

<pallas_src>
import math
from functools import partial

import jax
import jax.numpy as jnp
import numpy as np
from jax.experimental import pallas as pl
from jax.experimental.pallas import tpu as pltpu


# ---------------- config (mirrors the PyTorch `config` object) -------------
class Config:
    d_embed = 32
    d_k = 8
    d_v = 8
    n_heads = 4
    d_ff = 64


EPS = 1e-5          # nn.LayerNorm default
NEG = -1e9          # masked_fill value used by the reference module
N_IA_TYPES = 402    # interaction-type embedding vocabulary
N_IA_FEAT = 6       # interaction-matrix feature channels


# ---------------- Pallas kernel: full EncoderLayer_if forward ---------------
def make_kernel(B, S, E, H, DK, DV):
    N = B * H                 # flattened (batch, head) dim, n = b*H + h
    F = 2 * DK + DV           # fused per-head [q|k|v] feature width
    scale = 1.0 / math.sqrt(DK)

    def kernel(x_ref, ext_ref, wqkv_ref, wo_ref, w1_ref, w2_ref, ln_ref,
               out_ref, attn_ref):
        x2 = x_ref[...]                                        # (B*S, E)

        # ---- head-batched fused Q/K/V projection (one batched matmul) ----
        # Heads live in the LEADING batch dim -> no lane-boundary slicing.
        x3 = x2.reshape(B, S, E)
        x_n = jnp.broadcast_to(x3[:, None], (B, H, S, E)).reshape(N, S, E)
        w_n = jnp.broadcast_to(wqkv_ref[...][None], (B, H, E, F)).reshape(N, E, F)
        qkv = jnp.einsum('nse,nef->nsf', x_n, w_n,
                         preferred_element_type=jnp.float32)    # (N, S, F)
        q = qkv[:, :, 0:DK]                                     # (N, S, DK)
        k = qkv[:, :, DK:2 * DK]
        v = qkv[:, :, 2 * DK:2 * DK + DV]

        # ---- scores + (precomputed) bias + combined mask + softmax --------
        # ext_ref[0] = ia_type + ia_feat bias, ext_ref[1] = combined mask 0/1.
        # Final value at any masked position is exactly NEG, matching the
        # reference's three masked_fill_ calls.
        bias = ext_ref[0]                                       # (N, S, S)
        maskf = ext_ref[1]                                      # (N, S, S)
        s = jnp.einsum('nqd,nkd->nqk', q, k,
                       preferred_element_type=jnp.float32) * scale
        s = jnp.where(maskf > 0.5, jnp.float32(NEG), s + bias)
        s = s - jnp.max(s, axis=-1, keepdims=True)
        p = jnp.exp(s)
        p = p / jnp.sum(p, axis=-1, keepdims=True)              # exact divide
        attn_ref[...] = p                                       # single store

        # ---- context + output projection, summed over heads ---------------
        ctx = jnp.einsum('nqk,nkd->nqd', p, v,
                         preferred_element_type=jnp.float32)    # (N, S, DV)
        wo_n = jnp.broadcast_to(wo_ref[...][None], (B, H, DV, E)).reshape(N, DV, E)
        proj = jnp.einsum('nqd,nde->nqe', ctx, wo_n,
                          preferred_element_type=jnp.float32)   # (N, S, E)
        attn_out = proj.reshape(B, H, S, E).sum(axis=1).reshape(B * S, E)

        # ---- add & LayerNorm 1 ---------------------------------------------
        ln = ln_ref[...]                                        # (4, E)
        h1 = attn_out + x2
        mu1 = jnp.mean(h1, axis=-1, keepdims=True)
        var1 = jnp.mean((h1 - mu1) ** 2, axis=-1, keepdims=True)
        h1n = (h1 - mu1) * jax.lax.rsqrt(var1 + EPS) * ln[0:1, :] + ln[1:2, :]

        # ---- position-wise FFN + add & LayerNorm 2 --------------------------
        # TODO(synk): training-mode Dropout(0.4 / 0.5) is stochastic and not
        # reproduced here (eval semantics only).
        f1 = jnp.maximum(jnp.dot(h1n, w1_ref[...],
                                 preferred_element_type=jnp.float32), 0.0)
        h2 = jnp.dot(f1, w2_ref[...], preferred_element_type=jnp.float32) + h1n
        mu2 = jnp.mean(h2, axis=-1, keepdims=True)
        var2 = jnp.mean((h2 - mu2) ** 2, axis=-1, keepdims=True)
        out_ref[...] = ((h2 - mu2) * jax.lax.rsqrt(var2 + EPS)
                        * ln[2:3, :] + ln[3:4, :])

    return kernel


# ---------------- one-time weight preprocessing (outside jit) ---------------
def prepare_params(params, cfg):
    E, H, DK, DV = cfg.d_embed, cfg.n_heads, cfg.d_k, cfg.d_v
    wq_h = params["wq"].T.reshape(E, H, DK).transpose(1, 0, 2)   # (H, E, DK)
    wk_h = params["wk"].T.reshape(E, H, DK).transpose(1, 0, 2)
    wv_h = params["wv"].T.reshape(E, H, DV).transpose(1, 0, 2)
    return {
        "emb": params["emb"],                                    # (402, H)
        "wia_t": params["wia"].T,                                # (6, H)
        "wqkv_h": jnp.concatenate([wq_h, wk_h, wv_h], axis=-1),  # (H, E, 2DK+DV)
        "wo_h": params["wo"].T.reshape(H, DV, E),                # (H, DV, E)
        "w1_t": params["w1"].T,                                  # (E, DFF)
        "w2_t": params["w2"].T,                                  # (DFF, E)
        "ln": jnp.stack([params["g1"], params["b1"],
                         params["g2"], params["b2"]], axis=0),   # (4, E)
    }


# ---------------- wrapper: layout plumbing + pallas_call ---------------------
def encoder_layer_if_forward(prepped, enc_inputs, enc_self_attn_mask, attn_if,
                             interaction_type, interaction_matrix,
                             res_mass_centor, distance_matrix, *, cfg):
    # res_mass_centor / distance_matrix accepted but unused, as in PyTorch.
    del res_mass_centor, distance_matrix
    B, S, E = enc_inputs.shape
    H, DK, DV = cfg.n_heads, cfg.d_k, cfg.d_v
    N = B * H

    x2 = enc_inputs.reshape(B * S, E).astype(jnp.float32)

    # TODO(synk): the nn.Embedding(402, n_heads) gather has no efficient
    # in-kernel equivalent at this size; bias = ia_type + relu(Linear(imat))
    # is computed here and packed with the combined mask into ONE operand.
    ia_type = prepped["emb"][interaction_type]                       # (B,S,S,H)
    ia_feat = jnp.maximum(
        interaction_matrix.astype(jnp.float32) @ prepped["wia_t"], 0.0)
    bias_n = (ia_type + ia_feat).transpose(0, 3, 1, 2).reshape(N, S, S)
    maskc = jnp.logical_or(enc_self_attn_mask, attn_if)              # (B,S,S)
    mask_n = jnp.broadcast_to(maskc[:, None], (B, H, S, S)).reshape(N, S, S)
    att_ext = jnp.stack([bias_n.astype(jnp.float32),
                         mask_n.astype(jnp.float32)], axis=0)        # (2,N,S,S)

    kernel = make_kernel(B, S, E, H, DK, DV)
    vmem = pltpu.MemorySpace.VMEM
    cost = pl.CostEstimate(flops=450_000, transcendentals=600,
                           bytes_accessed=48_000)

    out2, attn_n = pl.pallas_call(
        kernel,
        out_shape=(jax.ShapeDtypeStruct((B * S, E), jnp.float32),
                   jax.ShapeDtypeStruct((N, S, S), jnp.float32)),
        in_specs=[pl.BlockSpec(memory_space=vmem),   # x (B*S, E)
                  pl.BlockSpec(memory_space=vmem),   # bias + mask (2, N, S, S)
                  pl.BlockSpec(memory_space=vmem),   # fused W_QKV (H, E, 2DK+DV)
                  pl.BlockSpec(memory_space=vmem),   # W_O per head (H, DV, E)
                  pl.BlockSpec(memory_space=vmem),   # ffn W1 (E, DFF)
                  pl.BlockSpec(memory_space=vmem),   # ffn W2 (DFF, E)
                  pl.BlockSpec(memory_space=vmem)],  # packed LN params (4, E)
        out_specs=(pl.BlockSpec(memory_space=vmem),
                   pl.BlockSpec(memory_space=vmem)),
        cost_estimate=cost,
    )(x2, att_ext, prepped["wqkv_h"], prepped["wo_h"],
      prepped["w1_t"], prepped["w2_t"], prepped["ln"])

    enc_outputs = out2.reshape(B, S, E)
    attn = attn_n.reshape(B, H, S, S)        # n = b*H + h -> free reshape only
    return enc_outputs, attn


# ---------------- pure-JAX reference (mirrors PyTorch step by step) ----------
def _layernorm(x, g, b):
    mu = jnp.mean(x, axis=-1, keepdims=True)
    var = jnp.mean((x - mu) ** 2, axis=-1, keepdims=True)
    return (x - mu) / jnp.sqrt(var + EPS) * g + b


def encoder_layer_if_ref(params, enc_inputs, attn_mask, attn_if, itype, imat,
                         res_mass_centor, distance_matrix, *, cfg):
    del res_mass_centor, distance_matrix
    B, S, E = enc_inputs.shape
    H, DK, DV = cfg.n_heads, cfg.d_k, cfg.d_v
    residual = enc_inputs
    Q = (enc_inputs @ params["wq"].T).reshape(B, S, H, DK).transpose(0, 2, 1, 3)
    K = (enc_inputs @ params["wk"].T).reshape(B, S, H, DK).transpose(0, 2, 1, 3)
    V = (enc_inputs @ params["wv"].T).reshape(B, S, H, DV).transpose(0, 2, 1, 3)
    ia_type = params["emb"][itype].transpose(0, 3, 1, 2)             # (B,H,S,S)
    ia_feat = jnp.maximum(imat.astype(jnp.float32) @ params["wia"].T, 0.0)
    ia_feat = ia_feat.transpose(0, 3, 1, 2)
    am = attn_mask[:, None, :, :]
    aif = attn_if[:, None, :, :]
    scores1 = jnp.einsum('bhqd,bhkd->bhqk', Q, K) / math.sqrt(DK)
    bias = jnp.where(aif, NEG, ia_type + ia_feat)
    scores = scores1 + bias
    scores = jnp.where(am, NEG, scores)
    scores = jnp.where(aif, NEG, scores)
    attn = jax.nn.softmax(scores, axis=-1)
    context = jnp.einsum('bhqk,bhkd->bhqd', attn, V)
    context = context.transpose(0, 2, 1, 3).reshape(B, S, H * DV)
    h1 = _layernorm(context @ params["wo"].T + residual, params["g1"], params["b1"])
    f = jnp.maximum(h1 @ params["w1"].T, 0.0) @ params["w2"].T
    return _layernorm(f + h1, params["g2"], params["b2"]), attn


# ---------------- main -------------------------------------------------------
if __name__ == "__main__":
    cfg = Config()
    B, S, E = 2, 8, cfg.d_embed
    H, DK, DV, DFF = cfg.n_heads, cfg.d_k, cfg.d_v, cfg.d_ff

    key = jax.random.PRNGKey(0)
    keys = jax.random.split(key, 16)

    enc_inputs = jax.random.normal(keys[0], (B, S, E), jnp.float32)
    lens = jnp.array([6, 5], dtype=jnp.int32)
    key_pad = jnp.arange(S)[None, :] >= lens[:, None]                # (B,S) bool
    enc_self_attn_mask = jnp.broadcast_to(key_pad[:, None, :], (B, S, S))
    attn_if = jax.random.bernoulli(keys[1], 0.25, (B, S, S))
    interaction_type = jax.random.randint(keys[2], (B, S, S), 0, N_IA_TYPES, jnp.int32)
    interaction_matrix = jax.random.normal(keys[3], (B, S, S, N_IA_FEAT), jnp.float32)
    res_mass_centor = jax.random.normal(keys[4], (B, S, 3), jnp.float32)   # unused
    distance_matrix = jax.random.normal(keys[5], (B, S, S), jnp.float32)   # unused

    params = {
        "wq": 0.2 * jax.random.normal(keys[6], (H * DK, E), jnp.float32),
        "wk": 0.2 * jax.random.normal(keys[7], (H * DK, E), jnp.float32),
        "wv": 0.2 * jax.random.normal(keys[8], (H * DV, E), jnp.float32),
        "wo": 0.2 * jax.random.normal(keys[9], (E, H * DV), jnp.float32),
        "emb": 0.1 * jax.random.normal(keys[10], (N_IA_TYPES, H), jnp.float32),
        "wia": 0.3 * jax.random.normal(keys[11], (H, N_IA_FEAT), jnp.float32),
        "g1": 1.0 + 0.1 * jax.random.normal(keys[12], (E,), jnp.float32),
        "b1": 0.1 * jax.random.normal(keys[13], (E,), jnp.float32),
        "w1": 0.2 * jax.random.normal(keys[14], (DFF, E), jnp.float32),
        "w2": 0.2 * jax.random.normal(keys[15], (E, DFF), jnp.float32),
        "g2": jnp.ones((E,), jnp.float32),
        "b2": jnp.zeros((E,), jnp.float32),
    }

    # one-time weight preprocessing, hoisted out of the jitted forward
    prepped = prepare_params(params, cfg)

    fwd = jax.jit(partial(encoder_layer_if_forward, cfg=cfg))
    out, attn = fwd(prepped, enc_inputs, enc_self_attn_mask, attn_if,
                    interaction_type, interaction_matrix,
                    res_mass_centor, distance_matrix)
    out, attn = jax.block_until_ready((out, attn))

    ref_out, ref_attn = encoder_layer_if_ref(
        params, enc_inputs, enc_self_attn_mask, attn_if,
        interaction_type, interaction_matrix,
        res_mass_centor, distance_matrix, cfg=cfg)

    np.testing.assert_allclose(np.asarray(out), np.asarray(ref_out),
                               rtol=2e-3, atol=2e-3)
    np.testing.assert_allclose(np.asarray(attn), np.asarray(ref_attn),
                               rtol=2e-3, atol=2e-3)
    print("KERNEL_OK")
</pallas_src>

<mosaic_0001>
module attributes {stable_mosaic.version = 11 : i64} {
  func.func @kernel(%arg0: memref<16x32xf32, #tpu.memory_space<vmem>>, %arg1: memref<2x8x8x8xf32, #tpu.memory_space<vmem>>, %arg2: memref<4x32x24xf32, #tpu.memory_space<vmem>>, %arg3: memref<4x8x32xf32, #tpu.memory_space<vmem>>, %arg4: memref<32x64xf32, #tpu.memory_space<vmem>>, %arg5: memref<64x32xf32, #tpu.memory_space<vmem>>, %arg6: memref<4x32xf32, #tpu.memory_space<vmem>>, %arg7: memref<16x32xf32, #tpu.memory_space<vmem>>, %arg8: memref<8x8x8xf32, #tpu.memory_space<vmem>>) attributes {dimension_semantics = [], scalar_prefetch = 0 : i64, scratch_operands = 0 : i64, tpu.core_type = #tpu.core_type<tc>} {
    %c0 = arith.constant 0 : index
    %c0_0 = arith.constant 0 : index
    %0 = vector.load %arg0[%c0, %c0_0] : memref<16x32xf32, #tpu.memory_space<vmem>>, vector<16x32xf32>
    %1 = vector.shape_cast %0 : vector<16x32xf32> to vector<2x8x32xf32>
    %2 = vector.shape_cast %1 : vector<2x8x32xf32> to vector<2x1x8x32xf32>
    %3 = vector.shape_cast %2 : vector<2x1x8x32xf32> to vector<2x1x8x32xf32>
    %4 = vector.broadcast %3 : vector<2x1x8x32xf32> to vector<2x4x8x32xf32>
    %5 = vector.shape_cast %4 : vector<2x4x8x32xf32> to vector<8x8x32xf32>
    %c0_1 = arith.constant 0 : index
    %c0_2 = arith.constant 0 : index
    %c0_3 = arith.constant 0 : index
    %6 = vector.load %arg2[%c0_1, %c0_2, %c0_3] : memref<4x32x24xf32, #tpu.memory_space<vmem>>, vector<4x32x24xf32>
    %7 = vector.shape_cast %6 : vector<4x32x24xf32> to vector<1x4x32x24xf32>
    %8 = vector.shape_cast %7 : vector<1x4x32x24xf32> to vector<1x4x32x24xf32>
    %9 = vector.broadcast %8 : vector<1x4x32x24xf32> to vector<2x4x32x24xf32>
    %10 = vector.shape_cast %9 : vector<2x4x32x24xf32> to vector<8x32x24xf32>
    "tpu.trace_start"() <{level = 10 : i32, message = "nse,nef->nsf"}> : () -> ()
    %cst = arith.constant dense<0.000000e+00> : vector<8x8x24xf32>
    %11 = tpu.matmul %5, %10, %cst {dimension_numbers = #tpu.dot_dimension_numbers<[2], [1], [1], [2], [0, 0, 0, 1, 1, 2], [0], [0]>} : vector<8x8x32xf32>, vector<8x32x24xf32>, vector<8x8x24xf32> -> vector<8x8x24xf32>
    "tpu.trace_stop"() : () -> ()
    %12 = vector.extract_strided_slice %11 {offsets = [0, 0, 0], sizes = [8, 8, 8], strides = [1, 1, 1]} : vector<8x8x24xf32> to vector<8x8x8xf32>
    %13 = vector.extract_strided_slice %11 {offsets = [0, 0, 8], sizes = [8, 8, 8], strides = [1, 1, 1]} : vector<8x8x24xf32> to vector<8x8x8xf32>
    %14 = vector.extract_strided_slice %11 {offsets = [0, 0, 16], sizes = [8, 8, 8], strides = [1, 1, 1]} : vector<8x8x24xf32> to vector<8x8x8xf32>
    %c0_4 = arith.constant 0 : index
    %c0_5 = arith.constant 0 : index
    %c0_6 = arith.constant 0 : index
    %c0_7 = arith.constant 0 : index
    %15 = vector.load %arg1[%c0_4, %c0_5, %c0_6, %c0_7] : memref<2x8x8x8xf32, #tpu.memory_space<vmem>>, vector<1x8x8x8xf32>
    %16 = vector.shape_cast %15 : vector<1x8x8x8xf32> to vector<8x8x8xf32>
    %c1 = arith.constant 1 : index
    %c0_8 = arith.constant 0 : index
    %c0_9 = arith.constant 0 : index
    %c0_10 = arith.constant 0 : index
    %17 = vector.load %arg1[%c1, %c0_8, %c0_9, %c0_10] : memref<2x8x8x8xf32, #tpu.memory_space<vmem>>, vector<1x8x8x8xf32>
    %18 = vector.shape_cast %17 : vector<1x8x8x8xf32> to vector<8x8x8xf32>
    "tpu.trace_start"() <{level = 10 : i32, message = "nqd,nkd->nqk"}> : () -> ()
    %cst_11 = arith.constant dense<0.000000e+00> : vector<8x8x8xf32>
    %19 = tpu.matmul %12, %13, %cst_11 {dimension_numbers = #tpu.dot_dimension_numbers<[2], [2], [1], [1], [0, 0, 0, 1, 1, 1], [0], [0]>} : vector<8x8x8xf32>, vector<8x8x8xf32>, vector<8x8x8xf32> -> vector<8x8x8xf32>
    "tpu.trace_stop"() : () -> ()
    %cst_12 = arith.constant 0.353553385 : f32
    %20 = vector.broadcast %cst_12 : f32 to vector<8x8x8xf32>
    %21 = arith.mulf %19, %20 : vector<8x8x8xf32>
    %cst_13 = arith.constant 5.000000e-01 : f32
    %22 = vector.broadcast %cst_13 : f32 to vector<8x8x8xf32>
    %23 = arith.cmpf ogt, %18, %22 : vector<8x8x8xf32>
    %24 = arith.addf %21, %16 : vector<8x8x8xf32>
    %cst_14 = arith.constant -1.000000e+09 : f32
    %25 = vector.broadcast %cst_14 : f32 to vector<8x8x8xf32>
    %26 = arith.select %23, %25, %24 : vector<8x8x8xi1>, vector<8x8x8xf32>
    %cst_15 = arith.constant dense<0xFF800000> : vector<8x8xf32>
    %27 = vector.multi_reduction <maximumf>, %26, %cst_15 [2] : vector<8x8x8xf32> to vector<8x8xf32>
    %28 = vector.shape_cast %27 : vector<8x8xf32> to vector<8x8x1xf32>
    %29 = vector.broadcast %28 : vector<8x8x1xf32> to vector<8x8x8xf32>
    %30 = arith.subf %26, %29 : vector<8x8x8xf32>
    %31 = math.exp %30 : vector<8x8x8xf32>
    %cst_16 = arith.constant dense<0.000000e+00> : vector<8x8xf32>
    %32 = vector.multi_reduction <add>, %31, %cst_16 [2] : vector<8x8x8xf32> to vector<8x8xf32>
    %33 = vector.shape_cast %32 : vector<8x8xf32> to vector<8x8x1xf32>
    %34 = vector.broadcast %33 : vector<8x8x1xf32> to vector<8x8x8xf32>
    %35 = arith.divf %31, %34 : vector<8x8x8xf32>
    %c0_17 = arith.constant 0 : index
    %c0_18 = arith.constant 0 : index
    %c0_19 = arith.constant 0 : index
    %36 = vector.load %arg8[%c0_17, %c0_18, %c0_19] : memref<8x8x8xf32, #tpu.memory_space<vmem>>, vector<8x8x8xf32>
    tpu.vector_store %arg8[%c0_17, %c0_18, %c0_19], %35 {strides = array<i32>} : memref<8x8x8xf32, #tpu.memory_space<vmem>>, vector<8x8x8xf32>,
    "tpu.trace_start"() <{level = 10 : i32, message = "nqk,nkd->nqd"}> : () -> ()
    %cst_20 = arith.constant dense<0.000000e+00> : vector<8x8x8xf32>
    %37 = tpu.matmul %35, %14, %cst_20 {dimension_numbers = #tpu.dot_dimension_numbers<[2], [1], [1], [2], [0, 0, 0, 1, 1, 2], [0], [0]>} : vector<8x8x8xf32>, vector<8x8x8xf32>, vector<8x8x8xf32> -> vector<8x8x8xf32>
    "tpu.trace_stop"() : () -> ()
    %c0_21 = arith.constant 0 : index
    %c0_22 = arith.constant 0 : index
    %c0_23 = arith.constant 0 : index
    %38 = vector.load %arg3[%c0_21, %c0_22, %c0_23] : memref<4x8x32xf32, #tpu.memory_space<vmem>>, vector<4x8x32xf32>
    %39 = vector.shape_cast %38 : vector<4x8x32xf32> to vector<1x4x8x32xf32>
    %40 = vector.shape_cast %39 : vector<1x4x8x32xf32> to vector<1x4x8x32xf32>
    %41 = vector.broadcast %40 : vector<1x4x8x32xf32> to vector<2x4x8x32xf32>
    %42 = vector.shape_cast %41 : vector<2x4x8x32xf32> to vector<8x8x32xf32>
    "tpu.trace_start"() <{level = 10 : i32, message = "nqd,nde->nqe"}> : () -> ()
    %cst_24 = arith.constant dense<0.000000e+00> : vector<8x8x32xf32>
    %43 = tpu.matmul %37, %42, %cst_24 {dimension_numbers = #tpu.dot_dimension_numbers<[2], [1], [1], [2], [0, 0, 0, 1, 1, 2], [0], [0]>} : vector<8x8x8xf32>, vector<8x8x32xf32>, vector<8x8x32xf32> -> vector<8x8x32xf32>
    "tpu.trace_stop"() : () -> ()
    %44 = vector.shape_cast %43 : vector<8x8x32xf32> to vector<2x4x8x32xf32>
    %cst_25 = arith.constant dense<0.000000e+00> : vector<2x8x32xf32>
    %45 = vector.multi_reduction <add>, %44, %cst_25 [1] : vector<2x4x8x32xf32> to vector<2x8x32xf32>
    %46 = vector.shape_cast %45 : vector<2x8x32xf32> to vector<16x32xf32>
    %c0_26 = arith.constant 0 : index
    %c0_27 = arith.constant 0 : index
    %47 = vector.load %arg6[%c0_26, %c0_27] : memref<4x32xf32, #tpu.memory_space<vmem>>, vector<4x32xf32>
    %48 = arith.addf %46, %0 : vector<16x32xf32>
    %cst_28 = arith.constant dense<0.000000e+00> : vector<16xf32>
    %49 = vector.multi_reduction <add>, %48, %cst_28 [1] : vector<16x32xf32> to vector<16xf32>
    %50 = vector.shape_cast %49 : vector<16xf32> to vector<16x1xf32>
    %cst_29 = arith.constant 3.200000e+01 : f32
    %51 = vector.broadcast %cst_29 : f32 to vector<16x1xf32>
    %52 = arith.divf %50, %51 : vector<16x1xf32>
    %53 = vector.broadcast %52 : vector<16x1xf32> to vector<16x32xf32>
    %54 = arith.subf %48, %53 : vector<16x32xf32>
    %55 = arith.mulf %54, %54 : vector<16x32xf32>
    %cst_30 = arith.constant dense<0.000000e+00> : vector<16xf32>
    %56 = vector.multi_reduction <add>, %55, %cst_30 [1] : vector<16x32xf32> to vector<16xf32>
    %57 = vector.shape_cast %56 : vector<16xf32> to vector<16x1xf32>
    %cst_31 = arith.constant 3.200000e+01 : f32
    %58 = vector.broadcast %cst_31 : f32 to vector<16x1xf32>
    %59 = arith.divf %57, %58 : vector<16x1xf32>
    %60 = vector.broadcast %52 : vector<16x1xf32> to vector<16x32xf32>
    %61 = arith.subf %48, %60 : vector<16x32xf32>
    %cst_32 = arith.constant 9.99999974E-6 : f32
    %62 = vector.broadcast %cst_32 : f32 to vector<16x1xf32>
    %63 = arith.addf %59, %62 : vector<16x1xf32>
    %64 = math.rsqrt %63 : vector<16x1xf32>
    %65 = vector.broadcast %64 : vector<16x1xf32> to vector<16x32xf32>
    %66 = arith.mulf %61, %65 : vector<16x32xf32>
    %67 = vector.extract_strided_slice %47 {offsets = [0, 0], sizes = [1, 32], strides = [1, 1]} : vector<4x32xf32> to vector<1x32xf32>
    %68 = vector.broadcast %67 : vector<1x32xf32> to vector<16x32xf32>
    %69 = arith.mulf %66, %68 : vector<16x32xf32>
    %70 = vector.extract_strided_slice %47 {offsets = [1, 0], sizes = [1, 32], strides = [1, 1]} : vector<4x32xf32> to vector<1x32xf32>
    %71 = vector.broadcast %70 : vector<1x32xf32> to vector<16x32xf32>
    %72 = arith.addf %69, %71 : vector<16x32xf32>
    %c0_33 = arith.constant 0 : index
    %c0_34 = arith.constant 0 : index
    %73 = vector.load %arg4[%c0_33, %c0_34] : memref<32x64xf32, #tpu.memory_space<vmem>>, vector<32x64xf32>
    %cst_35 = arith.constant dense<0.000000e+00> : vector<16x64xf32>
    %74 = tpu.matmul %72, %73, %cst_35 {dimension_numbers = #tpu.dot_dimension_numbers<[1], [0], [0], [1], [0, 0, 1, 1], [], []>} : vector<16x32xf32>, vector<32x64xf32>, vector<16x64xf32> -> vector<16x64xf32>
    %cst_36 = arith.constant 0.000000e+00 : f32
    %75 = vector.broadcast %cst_36 : f32 to vector<16x64xf32>
    %76 = arith.maximumf %74, %75 : vector<16x64xf32>
    %c0_37 = arith.constant 0 : index
    %c0_38 = arith.constant 0 : index
    %77 = vector.load %arg5[%c0_37, %c0_38] : memref<64x32xf32, #tpu.memory_space<vmem>>, vector<64x32xf32>
    %cst_39 = arith.constant dense<0.000000e+00> : vector<16x32xf32>
    %78 = tpu.matmul %76, %77, %cst_39 {dimension_numbers = #tpu.dot_dimension_numbers<[1], [0], [0], [1], [0, 0, 1, 1], [], []>} : vector<16x64xf32>, vector<64x32xf32>, vector<16x32xf32> -> vector<16x32xf32>
    %79 = arith.addf %78, %72 : vector<16x32xf32>
    %cst_40 = arith.constant dense<0.000000e+00> : vector<16xf32>
    %80 = vector.multi_reduction <add>, %79, %cst_40 [1] : vector<16x32xf32> to vector<16xf32>
    %81 = vector.shape_cast %80 : vector<16xf32> to vector<16x1xf32>
    %cst_41 = arith.constant 3.200000e+01 : f32
    %82 = vector.broadcast %cst_41 : f32 to vector<16x1xf32>
    %83 = arith.divf %81, %82 : vector<16x1xf32>
    %84 = vector.broadcast %83 : vector<16x1xf32> to vector<16x32xf32>
    %85 = arith.subf %79, %84 : vector<16x32xf32>
    %86 = arith.mulf %85, %85 : vector<16x32xf32>
    %cst_42 = arith.constant dense<0.000000e+00> : vector<16xf32>
    %87 = vector.multi_reduction <add>, %86, %cst_42 [1] : vector<16x32xf32> to vector<16xf32>
    %88 = vector.shape_cast %87 : vector<16xf32> to vector<16x1xf32>
    %cst_43 = arith.constant 3.200000e+01 : f32
    %89 = vector.broadcast %cst_43 : f32 to vector<16x1xf32>
    %90 = arith.divf %88, %89 : vector<16x1xf32>
    %91 = vector.broadcast %83 : vector<16x1xf32> to vector<16x32xf32>
    %92 = arith.subf %79, %91 : vector<16x32xf32>
    %cst_44 = arith.constant 9.99999974E-6 : f32
    %93 = vector.broadcast %cst_44 : f32 to vector<16x1xf32>
    %94 = arith.addf %90, %93 : vector<16x1xf32>
    %95 = math.rsqrt %94 : vector<16x1xf32>
    %96 = vector.broadcast %95 : vector<16x1xf32> to vector<16x32xf32>
    %97 = arith.mulf %92, %96 : vector<16x32xf32>
    %98 = vector.extract_strided_slice %47 {offsets = [2, 0], sizes = [1, 32], strides = [1, 1]} : vector<4x32xf32> to vector<1x32xf32>
    %99 = vector.broadcast %98 : vector<1x32xf32> to vector<16x32xf32>
    %100 = arith.mulf %97, %99 : vector<16x32xf32>
    %101 = vector.extract_strided_slice %47 {offsets = [3, 0], sizes = [1, 32], strides = [1, 1]} : vector<4x32xf32> to vector<1x32xf32>
    %102 = vector.broadcast %101 : vector<1x32xf32> to vector<16x32xf32>
    %103 = arith.addf %100, %102 : vector<16x32xf32>
    %c0_45 = arith.constant 0 : index
    %c0_46 = arith.constant 0 : index
    %104 = vector.load %arg7[%c0_45, %c0_46] : memref<16x32xf32, #tpu.memory_space<vmem>>, vector<16x32xf32>
    tpu.vector_store %arg7[%c0_45, %c0_46], %103 {strides = array<i32>} : memref<16x32xf32, #tpu.memory_space<vmem>>, vector<16x32xf32>,
    return
  }
}

</mosaic_0001>

<llo_original>
// kernel: encoder_layer_if_forward.1
$region0: #{encoder_layer_if_forward.1}
  #allocation0 [shape = 'u32[]', space=smem, size = 0x4, offset = 0x4, fixed_abs, tag = 'smem constant byte address 0x4 - core index']
  #allocation1 [shape = 'u32[144,128]{1,0:T(1,128)}', space=vmem, size = 0x12000, scoped, tag = 'internal scratch']
  %s0 = inlined_call_operand.vmem [shape: f32[16,32], index: 0, kind: input, shape index: {}]
  %s1 = inlined_call_operand.vmem [shape: f32[2,8,8,8], index: 1, kind: input, shape index: {}]
  %s2 = inlined_call_operand.vmem [shape: f32[4,32,24], index: 2, kind: input, shape index: {}]
  %s3 = inlined_call_operand.vmem [shape: f32[4,8,32], index: 3, kind: input, shape index: {}]
  %s4 = inlined_call_operand.vmem [shape: f32[32,64], index: 4, kind: input, shape index: {}]
  %s5 = inlined_call_operand.vmem [shape: f32[64,32], index: 5, kind: input, shape index: {}]
  %s6 = inlined_call_operand.vmem [shape: f32[4,32], index: 6, kind: input, shape index: {}]
  %s7 = inlined_call_operand.hbm [shape: f32[16,32], index: 7, kind: output, shape index: {0}]
  %s8 = inlined_call_operand.hbm [shape: f32[8,8,8], index: 8, kind: output, shape index: {1}]
  %9 = xla_tuple %s7, %s8
  %s10 = sld [smem:[#allocation0]]
  $region46: #{encoder_layer_if_forward.1} parent=0
    _
  %s12 = ssub.s32 1, %s10
  %s13 = scalar_select 0, %s12, %s10
  $region1: #{encoder_layer_if_forward.1} parent=0
    #allocation2 [shape = 'u8[8192]{0}', space=vmem, size = 0x2000, scoped, tag = 'output window, operand 0, single buffered']
    #allocation3 [shape = 's32[1]{0}', space=sflag, size = 0x4, scoped, tag = 'scoped memory for encoder_layer_if_forward.1']
    #allocation4 [shape = 'u8[32768]{0}', space=vmem, size = 0x8000, scoped, tag = 'output window, operand 1, single buffered']
    #allocation5 [shape = 's32[1]{0}', space=sflag, size = 0x4, scoped, tag = 'scoped memory for encoder_layer_if_forward.1']
    %14 = vsyncpa [#allocation3], 0
    %15 = vsyncpa [#allocation5], 0
    // Predicated region
    $region2: #{encoder_layer_if_forward.1} parent=1 // pred_check
      _
    $region3: #{encoder_layer_if_forward.1} parent=1 // pred_check_branch
      %17 = sbr.rel (0) target = $region5
    $region4: #{encoder_layer_if_forward.1} parent=1 // pred_region
      _
    $region5: #{encoder_layer_if_forward.1} parent=1 // pred_fallthru
      _
    // Predicated region
    $region6: #{encoder_layer_if_forward.1} parent=1 // pred_check
      _
    $region7: #{encoder_layer_if_forward.1} parent=1 // pred_check_branch
      %19 = sbr.rel (0) target = $region9
    $region8: #{encoder_layer_if_forward.1} parent=1 // pred_region
      _
    $region9: #{encoder_layer_if_forward.1} parent=1 // pred_fallthru
      _
    // Predicated region
    $region10: #{encoder_layer_if_forward.1} parent=1 // pred_check
      _
    $region11: #{encoder_layer_if_forward.1} parent=1 // pred_check_branch
      %21 = sbr.rel (0) target = $region13
    $region12: #{encoder_layer_if_forward.1} parent=1 // pred_region
      _
    $region13: #{encoder_layer_if_forward.1} parent=1 // pred_fallthru
      _
    // Predicated region
    $region14: #{encoder_layer_if_forward.1} parent=1 // pred_check
      _
    $region15: #{encoder_layer_if_forward.1} parent=1 // pred_check_branch
      %23 = sbr.rel (0) target = $region17
    $region16: #{encoder_layer_if_forward.1} parent=1 // pred_region
      _
    $region17: #{encoder_layer_if_forward.1} parent=1 // pred_fallthru
      _
    // Predicated region
    $region18: #{encoder_layer_if_forward.1} parent=1 // pred_check
      _
    $region19: #{encoder_layer_if_forward.1} parent=1 // pred_check_branch
      %25 = sbr.rel (0) target = $region21
    $region20: #{encoder_layer_if_forward.1} parent=1 // pred_region
      _
    $region21: #{encoder_layer_if_forward.1} parent=1 // pred_fallthru
      _
    // Predicated region
    $region22: #{encoder_layer_if_forward.1} parent=1 // pred_check
      _
    $region23: #{encoder_layer_if_forward.1} parent=1 // pred_check_branch
      %27 = sbr.rel (0) target = $region25
    $region24: #{encoder_layer_if_forward.1} parent=1 // pred_region
      _
    $region25: #{encoder_layer_if_forward.1} parent=1 // pred_fallthru
      _
    // Predicated region
    $region26: #{encoder_layer_if_forward.1} parent=1 // pred_check
      _
    $region27: #{encoder_layer_if_forward.1} parent=1 // pred_check_branch
      %29 = sbr.rel (0) target = $region29
    $region28: #{encoder_layer_if_forward.1} parent=1 // pred_region
      _
    $region29: #{encoder_layer_if_forward.1} parent=1 // pred_fallthru
      _
    %v30 = vld [vmem:[%s0] sm:$0xff]
    %v31 = vld [vmem:[%s0 + $0x8] sm:$0xff]
    %v32 = vld [vmem:[%s2] sm:$0xff]
    %v33 = vld [vmem:[%s2 + $0x8] sm:$0xff]
    %v34 = vld [vmem:[%s2 + $0x10] sm:$0xff]
    %v35 = vld [vmem:[%s2 + $0x18] sm:$0xff]
    %v36 = vld [vmem:[%s2 + $0x20] sm:$0xff]
    %v37 = vld [vmem:[%s2 + $0x28] sm:$0xff]
    %v38 = vld [vmem:[%s2 + $0x30] sm:$0xff]
    %v39 = vld [vmem:[%s2 + $0x38] sm:$0xff]
    %v40 = vld [vmem:[%s2 + $0x40] sm:$0xff]
    %v41 = vld [vmem:[%s2 + $0x48] sm:$0xff]
    %v42 = vld [vmem:[%s2 + $0x50] sm:$0xff]
    %v43 = vld [vmem:[%s2 + $0x58] sm:$0xff]
    %v44 = vld [vmem:[%s2 + $0x60] sm:$0xff]
    %v45 = vld [vmem:[%s2 + $0x68] sm:$0xff]
    %v46 = vld [vmem:[%s2 + $0x70] sm:$0xff]
    %v47 = vld [vmem:[%s2 + $0x78] sm:$0xff]
    %vm48 = vcmask 261120
    %v50 = vsel %vm48, %v30, 0
    %52 = vmatprep.subr.mxu0 0.0
    %53 = vmatpush1.msra.mxu0 0.0
    %54 = vmatprep.subr.mxu0 0.0
    %55 = vmatpush1.msra.mxu0 0.0
    %56 = vmatprep.subr.mxu0 0.0
    %57 = vmatpush1.msra.mxu0 0.0
    %58 = vmatprep.subr.mxu0 0.0
    %59 = vmatpush1.msra.mxu0 0.0
    %60 = vmatprep.subr.mxu0 0.0
    %61 = vmatpush1.msra.mxu0 0.0
    %62 = vmatprep.subr.mxu0 0.0
    %63 = vmatpush1.msra.mxu0 0.0
    %64 = vmatprep.subr.mxu0 0.0
    %65 = vmatpush1.msra.mxu0 0.0
    %66 = vmatprep.subr.mxu0 0.0
    %67 = vmatpush1.msra.mxu0 0.0
    %68 = vmatprep.subr.mxu0 0.0
    %69 = vmatpush1.msra.mxu0 0.0
    %70 = vmatprep.subr.mxu0 0.0
    %71 = vmatpush1.msra.mxu0 0.0
    %72 = vmatprep.subr.mxu0 0.0
    %73 = vmatpush1.msra.mxu0 0.0
    %74 = vmatprep.subr.mxu0 0.0
    %75 = vmatpush1.msra.mxu0 0.0
    %76 = vmatprep.subr.mxu0 0.0
    %77 = vmatpush1.msra.mxu0 %v35
    %78 = vmatprep.subr.mxu0 0.0
    %79 = vmatpush1.msra.mxu0 %v34
    %80 = vmatprep.subr.mxu0 0.0
    %81 = vmatpush1.msra.mxu0 %v33
    %82 = vmatprep.subr.mxu0 0.0
    %83 = vmatpush1.msra.mxu0 %v32
    %84 = vmatprep.subr.mxu0 0.0
    %85 = vmatpush2.msra.mxu0 0.0
    %86 = vmatprep.subr.mxu0 0.0
    %87 = vmatpush2.msra.mxu0 0.0
    %88 = vmatprep.subr.mxu0 0.0
    %89 = vmatpush2.msra.mxu0 0.0
    %90 = vmatprep.subr.mxu0 0.0
    %91 = vmatpush2.msra.mxu0 0.0
    %92 = vmatprep.subr.mxu0 0.0
    %93 = vmatpush2.msra.mxu0 0.0
    %94 = vmatprep.subr.mxu0 0.0
    %95 = vmatpush2.msra.mxu0 0.0
    %96 = vmatprep.subr.mxu0 0.0
    %97 = vmatpush2.msra.mxu0 0.0
    %98 = vmatprep.subr.mxu0 0.0
    %99 = vmatpush2.msra.mxu0 0.0
    %100 = vmatprep.subr.mxu0 0.0
    %101 = vmatpush2.msra.mxu0 0.0
    %102 = vmatprep.subr.mxu0 0.0
    %103 = vmatpush2.msra.mxu0 0.0
    %104 = vmatprep.subr.mxu0 0.0
    %105 = vmatpush2.msra.mxu0 0.0
    %106 = vmatprep.subr.mxu0 0.0
    %107 = vmatpush2.msra.mxu0 0.0
    %108 = vmatprep.subr.mxu0 0.0
    %109 = vmatpush2.msra.mxu0 0.0
    %110 = vmatprep.subr.mxu0 0.0
    %111 = vmatpush2.msra.mxu0 0.0
    %112 = vmatprep.subr.mxu0 0.0
    %113 = vmatpush2.msra.mxu0 0.0
    %114 = vmatprep.subr.mxu0 0.0
    %115 = vmatpush2.msra.mxu0 0.0
    %116 = vmatprep.mubr.f32.mxu0 0.0
    %117 = vmatmul.mubr.f32.gmra.mxu0 %v50
    %v118 = vpop.f32.mrf.mxu0
    %v119 = vadd.f32 0.0, %v118
    %v120 = vpop.f32.mrf.mxu0
    %121 = vdwg.mxu0
    %122 = vmatprep.subr.mxu0 0.0
    %123 = vmatpush1.msra.mxu0 0.0
    %124 = vmatprep.subr.mxu0 0.0
    %125 = vmatpush1.msra.mxu0 0.0
    %126 = vmatprep.subr.mxu0 0.0
    %127 = vmatpush1.msra.mxu0 0.0
    %128 = vmatprep.subr.mxu0 0.0
    %129 = vmatpush1.msra.mxu0 0.0
    %130 = vmatprep.subr.mxu0 0.0
    %131 = vmatpush1.msra.mxu0 0.0
    %132 = vmatprep.subr.mxu0 0.0
    %133 = vmatpush1.msra.mxu0 0.0
    %134 = vmatprep.subr.mxu0 0.0
    %135 = vmatpush1.msra.mxu0 0.0
    %136 = vmatprep.subr.mxu0 0.0
    %137 = vmatpush1.msra.mxu0 0.0
    %138 = vmatprep.subr.mxu0 0.0
    %139 = vmatpush1.msra.mxu0 0.0
    %140 = vmatprep.subr.mxu0 0.0
    %141 = vmatpush1.msra.mxu0 0.0
    %142 = vmatprep.subr.mxu0 0.0
    %143 = vmatpush1.msra.mxu0 0.0
    %144 = vmatprep.subr.mxu0 0.0
    %145 = vmatpush1.msra.mxu0 0.0
    %146 = vmatprep.subr.mxu0 0.0
    %147 = vmatpush1.msra.mxu0 %v39
    %148 = vmatprep.subr.mxu0 0.0
    %149 = vmatpush1.msra.mxu0 %v38
    %150 = vmatprep.subr.mxu0 0.0
    %151 = vmatpush1.msra.mxu0 %v37
    %152 = vmatprep.subr.mxu0 0.0
    %153 = vmatpush1.msra.mxu0 %v36
    %154 = vmatprep.subr.mxu0 0.0
    %155 = vmatpush2.msra.mxu0 0.0
    %156 = vmatprep.subr.mxu0 0.0
    %157 = vmatpush2.msra.mxu0 0.0
    %158 = vmatprep.subr.mxu0 0.0
    %159 = vmatpush2.msra.mxu0 0.0
    %160 = vmatprep.subr.mxu0 0.0
    %161 = vmatpush2.msra.mxu0 0.0
    %162 = vmatprep.subr.mxu0 0.0
    %163 = vmatpush2.msra.mxu0 0.0
    %164 = vmatprep.subr.mxu0 0.0
    %165 = vmatpush2.msra.mxu0 0.0
    %166 = vmatprep.subr.mxu0 0.0
    %167 = vmatpush2.msra.mxu0 0.0
    %168 = vmatprep.subr.mxu0 0.0
    %169 = vmatpush2.msra.mxu0 0.0
    %170 = vmatprep.subr.mxu0 0.0
    %171 = vmatpush2.msra.mxu0 0.0
    %172 = vmatprep.subr.mxu0 0.0
    %173 = vmatpush2.msra.mxu0 0.0
    %174 = vmatprep.subr.mxu0 0.0
    %175 = vmatpush2.msra.mxu0 0.0
    %176 = vmatprep.subr.mxu0 0.0
    %177 = vmatpush2.msra.mxu0 0.0
    %178 = vmatprep.subr.mxu0 0.0
    %179 = vmatpush2.msra.mxu0 0.0
    %180 = vmatprep.subr.mxu0 0.0
    %181 = vmatpush2.msra.mxu0 0.0
    %182 = vmatprep.subr.mxu0 0.0
    %183 = vmatpush2.msra.mxu0 0.0
    %184 = vmatprep.subr.mxu0 0.0
    %185 = vmatpush2.msra.mxu0 0.0
    %186 = vmatprep.mubr.f32.mxu0 0.0
    %187 = vmatmul.mubr.f32.gmra.mxu0 %v50
    %v188 = vpop.f32.mrf.mxu0
    %v189 = vadd.f32 0.0, %v188
    %v190 = vpop.f32.mrf.mxu0
    %191 = vdwg.mxu0
    %192 = vmatprep.subr.mxu0 0.0
    %193 = vmatpush1.msra.mxu0 0.0
    %194 = vmatprep.subr.mxu0 0.0
    %195 = vmatpush1.msra.mxu0 0.0
    %196 = vmatprep.subr.mxu0 0.0
    %197 = vmatpush1.msra.mxu0 0.0
    %198 = vmatprep.subr.mxu0 0.0
    %199 = vmatpush1.msra.mxu0 0.0
    %200 = vmatprep.subr.mxu0 0.0
    %201 = vmatpush1.msra.mxu0 0.0
    %202 = vmatprep.subr.mxu0 0.0
    %203 = vmatpush1.msra.mxu0 0.0
    %204 = vmatprep.subr.mxu0 0.0
    %205 = vmatpush1.msra.mxu0 0.0
    %206 = vmatprep.subr.mxu0 0.0
    %207 = vmatpush1.msra.mxu0 0.0
    %208 = vmatprep.subr.mxu0 0.0
    %209 = vmatpush1.msra.mxu0 0.0
    %210 = vmatprep.subr.mxu0 0.0
    %211 = vmatpush1.msra.mxu0 0.0
    %212 = vmatprep.subr.mxu0 0.0
    %213 = vmatpush1.msra.mxu0 0.0
    %214 = vmatprep.subr.mxu0 0.0
    %215 = vmatpush1.msra.mxu0 0.0
    %216 = vmatprep.subr.mxu0 0.0
    %217 = vmatpush1.msra.mxu0 %v43
    %218 = vmatprep.subr.mxu0 0.0
    %219 = vmatpush1.msra.mxu0 %v42
    %220 = vmatprep.subr.mxu0 0.0
    %221 = vmatpush1.msra.mxu0 %v41
    %222 = vmatprep.subr.mxu0 0.0
    %223 = vmatpush1.msra.mxu0 %v40
    %224 = vmatprep.subr.mxu0 0.0
    %225 = vmatpush2.msra.mxu0 0.0
    %226 = vmatprep.subr.mxu0 0.0
    %227 = vmatpush2.msra.mxu0 0.0
    %228 = vmatprep.subr.mxu0 0.0
    %229 = vmatpush2.msra.mxu0 0.0
    %230 = vmatprep.subr.mxu0 0.0
    %231 = vmatpush2.msra.mxu0 0.0
    %232 = vmatprep.subr.mxu0 0.0
    %233 = vmatpush2.msra.mxu0 0.0
    %234 = vmatprep.subr.mxu0 0.0
    %235 = vmatpush2.msra.mxu0 0.0
    %236 = vmatprep.subr.mxu0 0.0
    %237 = vmatpush2.msra.mxu0 0.0
    %238 = vmatprep.subr.mxu0 0.0
    %239 = vmatpush2.msra.mxu0 0.0
    %240 = vmatprep.subr.mxu0 0.0
    %241 = vmatpush2.msra.mxu0 0.0
    %242 = vmatprep.subr.mxu0 0.0
    %243 = vmatpush2.msra.mxu0 0.0
    %244 = vmatprep.subr.mxu0 0.0
    %245 = vmatpush2.msra.mxu0 0.0
    %246 = vmatprep.subr.mxu0 0.0
    %247 = vmatpush2.msra.mxu0 0.0
    %248 = vmatprep.subr.mxu0 0.0
    %249 = vmatpush2.msra.mxu0 0.0
    %250 = vmatprep.subr.mxu0 0.0
    %251 = vmatpush2.msra.mxu0 0.0
    %252 = vmatprep.subr.mxu0 0.0
    %253 = vmatpush2.msra.mxu0 0.0
    %254 = vmatprep.subr.mxu0 0.0
    %255 = vmatpush2.msra.mxu0 0.0
    %256 = vmatprep.mubr.f32.mxu0 0.0
    %257 = vmatmul.mubr.f32.gmra.mxu0 %v50
    %v258 = vpop.f32.mrf.mxu0
    %v259 = vadd.f32 0.0, %v258
    %v260 = vpop.f32.mrf.mxu0
    %261 = vdwg.mxu0
    %262 = vmatprep.subr.mxu0 0.0
    %263 = vmatpush1.msra.mxu0 0.0
    %264 = vmatprep.subr.mxu0 0.0
    %265 = vmatpush1.msra.mxu0 0.0
    %266 = vmatprep.subr.mxu0 0.0
    %267 = vmatpush1.msra.mxu0 0.0
    %268 = vmatprep.subr.mxu0 0.0
    %269 = vmatpush1.msra.mxu0 0.0
    %270 = vmatprep.subr.mxu0 0.0
    %271 = vmatpush1.msra.mxu0 0.0
    %272 = vmatprep.subr.mxu0 0.0
    %273 = vmatpush1.msra.mxu0 0.0
    %274 = vmatprep.subr.mxu0 0.0
    %275 = vmatpush1.msra.mxu0 0.0
    %276 = vmatprep.subr.mxu0 0.0
    %277 = vmatpush1.msra.mxu0 0.0
    %278 = vmatprep.subr.mxu0 0.0
    %279 = vmatpush1.msra.mxu0 0.0
    %280 = vmatprep.subr.mxu0 0.0
    %281 = vmatpush1.msra.mxu0 0.0
    %282 = vmatprep.subr.mxu0 0.0
    %283 = vmatpush1.msra.mxu0 0.0
    %284 = vmatprep.subr.mxu0 0.0
    %285 = vmatpush1.msra.mxu0 0.0
    %286 = vmatprep.subr.mxu0 0.0
    %287 = vmatpush1.msra.mxu0 %v47
    %288 = vmatprep.subr.mxu0 0.0
    %289 = vmatpush1.msra.mxu0 %v46
    %290 = vmatprep.subr.mxu0 0.0
    %291 = vmatpush1.msra.mxu0 %v45
    %292 = vmatprep.subr.mxu0 0.0
    %293 = vmatpush1.msra.mxu0 %v44
    %294 = vmatprep.subr.mxu0 0.0
    %295 = vmatpush2.msra.mxu0 0.0
    %296 = vmatprep.subr.mxu0 0.0
    %297 = vmatpush2.msra.mxu0 0.0
    %298 = vmatprep.subr.mxu0 0.0
    %299 = vmatpush2.msra.mxu0 0.0
    %300 = vmatprep.subr.mxu0 0.0
    %301 = vmatpush2.msra.mxu0 0.0
    %302 = vmatprep.subr.mxu0 0.0
    %303 = vmatpush2.msra.mxu0 0.0
    %304 = vmatprep.subr.mxu0 0.0
    %305 = vmatpush2.msra.mxu0 0.0
    %306 = vmatprep.subr.mxu0 0.0
    %307 = vmatpush2.msra.mxu0 0.0
    %308 = vmatprep.subr.mxu0 0.0
    %309 = vmatpush2.msra.mxu0 0.0
    %310 = vmatprep.subr.mxu0 0.0
    %311 = vmatpush2.msra.mxu0 0.0
    %312 = vmatprep.subr.mxu0 0.0
    %313 = vmatpush2.msra.mxu0 0.0
    %314 = vmatprep.subr.mxu0 0.0
    %315 = vmatpush2.msra.mxu0 0.0
    %316 = vmatprep.subr.mxu0 0.0
    %317 = vmatpush2.msra.mxu0 0.0
    %318 = vmatprep.subr.mxu0 0.0
    %319 = vmatpush2.msra.mxu0 0.0
    %320 = vmatprep.subr.mxu0 0.0
    %321 = vmatpush2.msra.mxu0 0.0
    %322 = vmatprep.subr.mxu0 0.0
    %323 = vmatpush2.msra.mxu0 0.0
    %324 = vmatprep.subr.mxu0 0.0
    %325 = vmatpush2.msra.mxu0 0.0
    %326 = vmatprep.mubr.f32.mxu0 0.0
    %327 = vmatmul.mubr.f32.gmra.mxu0 %v50
    %v328 = vpop.f32.mrf.mxu0
    %v329 = vadd.f32 0.0, %v328
    %v330 = vpop.f32.mrf.mxu0
    %331 = vdwg.mxu0
    %v333 = vsel %vm48, %v31, 0
    %335 = vmatprep.subr.mxu0 0.0
    %336 = vmatpush1.msra.mxu0 0.0
    %337 = vmatprep.subr.mxu0 0.0
    %338 = vmatpush1.msra.mxu0 0.0
    %339 = vmatprep.subr.mxu0 0.0
    %340 = vmatpush1.msra.mxu0 0.0
    %341 = vmatprep.subr.mxu0 0.0
    %342 = vmatpush1.msra.mxu0 0.0
    %343 = vmatprep.subr.mxu0 0.0
    %344 = vmatpush1.msra.mxu0 0.0
    %345 = vmatprep.subr.mxu0 0.0
    %346 = vmatpush1.msra.mxu0 0.0
    %347 = vmatprep.subr.mxu0 0.0
    %348 = vmatpush1.msra.mxu0 0.0
    %349 = vmatprep.subr.mxu0 0.0
    %350 = vmatpush1.msra.mxu0 0.0
    %351 = vmatprep.subr.mxu0 0.0
    %352 = vmatpush1.msra.mxu0 0.0
    %353 = vmatprep.subr.mxu0 0.0
    %354 = vmatpush1.msra.mxu0 0.0
    %355 = vmatprep.subr.mxu0 0.0
    %356 = vmatpush1.msra.mxu0 0.0
    %357 = vmatprep.subr.mxu0 0.0
    %358 = vmatpush1.msra.mxu0 0.0
    %359 = vmatprep.subr.mxu0 0.0
    %360 = vmatpush1.msra.mxu0 %v35
    %361 = vmatprep.subr.mxu0 0.0
    %362 = vmatpush1.msra.mxu0 %v34
    %363 = vmatprep.subr.mxu0 0.0
    %364 = vmatpush1.msra.mxu0 %v33
    %365 = vmatprep.subr.mxu0 0.0
    %366 = vmatpush1.msra.mxu0 %v32
    %367 = vmatprep.subr.mxu0 0.0
    %368 = vmatpush2.msra.mxu0 0.0
    %369 = vmatprep.subr.mxu0 0.0
    %370 = vmatpush2.msra.mxu0 0.0
    %371 = vmatprep.subr.mxu0 0.0
    %372 = vmatpush2.msra.mxu0 0.0
    %373 = vmatprep.subr.mxu0 0.0
    %374 = vmatpush2.msra.mxu0 0.0
    %375 = vmatprep.subr.mxu0 0.0
    %376 = vmatpush2.msra.mxu0 0.0
    %377 = vmatprep.subr.mxu0 0.0
    %378 = vmatpush2.msra.mxu0 0.0
    %379 = vmatprep.subr.mxu0 0.0
    %380 = vmatpush2.msra.mxu0 0.0
    %381 = vmatprep.subr.mxu0 0.0
    %382 = vmatpush2.msra.mxu0 0.0
    %383 = vmatprep.subr.mxu0 0.0
    %384 = vmatpush2.msra.mxu0 0.0
    %385 = vmatprep.subr.mxu0 0.0
    %386 = vmatpush2.msra.mxu0 0.0
    %387 = vmatprep.subr.mxu0 0.0
    %388 = vmatpush2.msra.mxu0 0.0
    %389 = vmatprep.subr.mxu0 0.0
    %390 = vmatpush2.msra.mxu0 0.0
    %391 = vmatprep.subr.mxu0 0.0
    %392 = vmatpush2.msra.mxu0 0.0
    %393 = vmatprep.subr.mxu0 0.0
    %394 = vmatpush2.msra.mxu0 0.0
    %395 = vmatprep.subr.mxu0 0.0
    %396 = vmatpush2.msra.mxu0 0.0
    %397 = vmatprep.subr.mxu0 0.0
    %398 = vmatpush2.msra.mxu0 0.0
    %399 = vmatprep.mubr.f32.mxu0 0.0
    %400 = vmatmul.mubr.f32.gmra.mxu0 %v333
    %v401 = vpop.f32.mrf.mxu0
    %v402 = vadd.f32 0.0, %v401
    %v403 = vpop.f32.mrf.mxu0
    %404 = vdwg.mxu0
    %405 = vmatprep.subr.mxu0 0.0
    %406 = vmatpush1.msra.mxu0 0.0
    %407 = vmatprep.subr.mxu0 0.0
    %408 = vmatpush1.msra.mxu0 0.0
    %409 = vmatprep.subr.mxu0 0.0
    %410 = vmatpush1.msra.mxu0 0.0
    %411 = vmatprep.subr.mxu0 0.0
    %412 = vmatpush1.msra.mxu0 0.0
    %413 = vmatprep.subr.mxu0 0.0
    %414 = vmatpush1.msra.mxu0 0.0
    %415 = vmatprep.subr.mxu0 0.0
    %416 = vmatpush1.msra.mxu0 0.0
    %417 = vmatprep.subr.mxu0 0.0
    %418 = vmatpush1.msra.mxu0 0.0
    %419 = vmatprep.subr.mxu0 0.0
    %420 = vmatpush1.msra.mxu0 0.0
    %421 = vmatprep.subr.mxu0 0.0
    %422 = vmatpush1.msra.mxu0 0.0
    %423 = vmatprep.subr.mxu0 0.0
    %424 = vmatpush1.msra.mxu0 0.0
    %425 = vmatprep.subr.mxu0 0.0
    %426 = vmatpush1.msra.mxu0 0.0
    %427 = vmatprep.subr.mxu0 0.0
    %428 = vmatpush1.msra.mxu0 0.0
    %429 = vmatprep.subr.mxu0 0.0
    %430 = vmatpush1.msra.mxu0 %v39
    %431 = vmatprep.subr.mxu0 0.0
    %432 = vmatpush1.msra.mxu0 %v38
    %433 = vmatprep.subr.mxu0 0.0
    %434 = vmatpush1.msra.mxu0 %v37
    %435 = vmatprep.subr.mxu0 0.0
    %436 = vmatpush1.msra.mxu0 %v36
    %437 = vmatprep.subr.mxu0 0.0
    %438 = vmatpush2.msra.mxu0 0.0
    %439 = vmatprep.subr.mxu0 0.0
    %440 = vmatpush2.msra.mxu0 0.0
    %441 = vmatprep.subr.mxu0 0.0
    %442 = vmatpush2.msra.mxu0 0.0
    %443 = vmatprep.subr.mxu0 0.0
    %444 = vmatpush2.msra.mxu0 0.0
    %445 = vmatprep.subr.mxu0 0.0
    %446 = vmatpush2.msra.mxu0 0.0
    %447 = vmatprep.subr.mxu0 0.0
    %448 = vmatpush2.msra.mxu0 0.0
    %449 = vmatprep.subr.mxu0 0.0
    %450 = vmatpush2.msra.mxu0 0.0
    %451 = vmatprep.subr.mxu0 0.0
    %452 = vmatpush2.msra.mxu0 0.0
    %453 = vmatprep.subr.mxu0 0.0
    %454 = vmatpush2.msra.mxu0 0.0
    %455 = vmatprep.subr.mxu0 0.0
    %456 = vmatpush2.msra.mxu0 0.0
    %457 = vmatprep.subr.mxu0 0.0
    %458 = vmatpush2.msra.mxu0 0.0
    %459 = vmatprep.subr.mxu0 0.0
    %460 = vmatpush2.msra.mxu0 0.0
    %461 = vmatprep.subr.mxu0 0.0
    %462 = vmatpush2.msra.mxu0 0.0
    %463 = vmatprep.subr.mxu0 0.0
    %464 = vmatpush2.msra.mxu0 0.0
    %465 = vmatprep.subr.mxu0 0.0
    %466 = vmatpush2.msra.mxu0 0.0
    %467 = vmatprep.subr.mxu0 0.0
    %468 = vmatpush2.msra.mxu0 0.0
    %469 = vmatprep.mubr.f32.mxu0 0.0
    %470 = vmatmul.mubr.f32.gmra.mxu0 %v333
    %v471 = vpop.f32.mrf.mxu0
    %v472 = vadd.f32 0.0, %v471
    %v473 = vpop.f32.mrf.mxu0
    %474 = vdwg.mxu0
    %475 = vmatprep.subr.mxu0 0.0
    %476 = vmatpush1.msra.mxu0 0.0
    %477 = vmatprep.subr.mxu0 0.0
    %478 = vmatpush1.msra.mxu0 0.0
    %479 = vmatprep.subr.mxu0 0.0
    %480 = vmatpush1.msra.mxu0 0.0
    %481 = vmatprep.subr.mxu0 0.0
    %482 = vmatpush1.msra.mxu0 0.0
    %483 = vmatprep.subr.mxu0 0.0
    %484 = vmatpush1.msra.mxu0 0.0
    %485 = vmatprep.subr.mxu0 0.0
    %486 = vmatpush1.msra.mxu0 0.0
    %487 = vmatprep.subr.mxu0 0.0
    %488 = vmatpush1.msra.mxu0 0.0
    %489 = vmatprep.subr.mxu0 0.0
    %490 = vmatpush1.msra.mxu0 0.0
    %491 = vmatprep.subr.mxu0 0.0
    %492 = vmatpush1.msra.mxu0 0.0
    %493 = vmatprep.subr.mxu0 0.0
    %494 = vmatpush1.msra.mxu0 0.0
    %495 = vmatprep.subr.mxu0 0.0
    %496 = vmatpush1.msra.mxu0 0.0
    %497 = vmatprep.subr.mxu0 0.0
    %498 = vmatpush1.msra.mxu0 0.0
    %499 = vmatprep.subr.mxu0 0.0
    %500 = vmatpush1.msra.mxu0 %v43
    %501 = vmatprep.subr.mxu0 0.0
    %502 = vmatpush1.msra.mxu0 %v42
    %503 = vmatprep.subr.mxu0 0.0
    %504 = vmatpush1.msra.mxu0 %v41
    %505 = vmatprep.subr.mxu0 0.0
    %506 = vmatpush1.msra.mxu0 %v40
    %507 = vmatprep.subr.mxu0 0.0
    %508 = vmatpush2.msra.mxu0 0.0
    %509 = vmatprep.subr.mxu0 0.0
    %510 = vmatpush2.msra.mxu0 0.0
    %511 = vmatprep.subr.mxu0 0.0
    %512 = vmatpush2.msra.mxu0 0.0
    %513 = vmatprep.subr.mxu0 0.0
    %514 = vmatpush2.msra.mxu0 0.0
    %515 = vmatprep.subr.mxu0 0.0
    %516 = vmatpush2.msra.mxu0 0.0
    %517 = vmatprep.subr.mxu0 0.0
    %518 = vmatpush2.msra.mxu0 0.0
    %519 = vmatprep.subr.mxu0 0.0
    %520 = vmatpush2.msra.mxu0 0.0
    %521 = vmatprep.subr.mxu0 0.0
    %522 = vmatpush2.msra.mxu0 0.0
    %523 = vmatprep.subr.mxu0 0.0
    %524 = vmatpush2.msra.mxu0 0.0
    %525 = vmatprep.subr.mxu0 0.0
    %526 = vmatpush2.msra.mxu0 0.0
    %527 = vmatprep.subr.mxu0 0.0
    %528 = vmatpush2.msra.mxu0 0.0
    %529 = vmatprep.subr.mxu0 0.0
    %530 = vmatpush2.msra.mxu0 0.0
    %531 = vmatprep.subr.mxu0 0.0
    %532 = vmatpush2.msra.mxu0 0.0
    %533 = vmatprep.subr.mxu0 0.0
    %534 = vmatpush2.msra.mxu0 0.0
    %535 = vmatprep.subr.mxu0 0.0
    %536 = vmatpush2.msra.mxu0 0.0
    %537 = vmatprep.subr.mxu0 0.0
    %538 = vmatpush2.msra.mxu0 0.0
    %539 = vmatprep.mubr.f32.mxu0 0.0
    %540 = vmatmul.mubr.f32.gmra.mxu0 %v333
    %v541 = vpop.f32.mrf.mxu0
    %v542 = vadd.f32 0.0, %v541
    %v543 = vpop.f32.mrf.mxu0
    %544 = vdwg.mxu0
    %545 = vmatprep.subr.mxu0 0.0
    %546 = vmatpush1.msra.mxu0 0.0
    %547 = vmatprep.subr.mxu0 0.0
    %548 = vmatpush1.msra.mxu0 0.0
    %549 = vmatprep.subr.mxu0 0.0
    %550 = vmatpush1.msra.mxu0 0.0
    %551 = vmatprep.subr.mxu0 0.0
    %552 = vmatpush1.msra.mxu0 0.0
    %553 = vmatprep.subr.mxu0 0.0
    %554 = vmatpush1.msra.mxu0 0.0
    %555 = vmatprep.subr.mxu0 0.0
    %556 = vmatpush1.msra.mxu0 0.0
    %557 = vmatprep.subr.mxu0 0.0
    %558 = vmatpush1.msra.mxu0 0.0
    %559 = vmatprep.subr.mxu0 0.0
    %560 = vmatpush1.msra.mxu0 0.0
    %561 = vmatprep.subr.mxu0 0.0
    %562 = vmatpush1.msra.mxu0 0.0
    %563 = vmatprep.subr.mxu0 0.0
    %564 = vmatpush1.msra.mxu0 0.0
    %565 = vmatprep.subr.mxu0 0.0
    %566 = vmatpush1.msra.mxu0 0.0
    %567 = vmatprep.subr.mxu0 0.0
    %568 = vmatpush1.msra.mxu0 0.0
    %569 = vmatprep.subr.mxu0 0.0
    %570 = vmatpush1.msra.mxu0 %v47
    %571 = vmatprep.subr.mxu0 0.0
    %572 = vmatpush1.msra.mxu0 %v46
    %573 = vmatprep.subr.mxu0 0.0
    %574 = vmatpush1.msra.mxu0 %v45
    %575 = vmatprep.subr.mxu0 0.0
    %576 = vmatpush1.msra.mxu0 %v44
    %577 = vmatprep.subr.mxu0 0.0
    %578 = vmatpush2.msra.mxu0 0.0
    %579 = vmatprep.subr.mxu0 0.0
    %580 = vmatpush2.msra.mxu0 0.0
    %581 = vmatprep.subr.mxu0 0.0
    %582 = vmatpush2.msra.mxu0 0.0
    %583 = vmatprep.subr.mxu0 0.0
    %584 = vmatpush2.msra.mxu0 0.0
    %585 = vmatprep.subr.mxu0 0.0
    %586 = vmatpush2.msra.mxu0 0.0
    %587 = vmatprep.subr.mxu0 0.0
    %588 = vmatpush2.msra.mxu0 0.0
    %589 = vmatprep.subr.mxu0 0.0
    %590 = vmatpush2.msra.mxu0 0.0
    %591 = vmatprep.subr.mxu0 0.0
    %592 = vmatpush2.msra.mxu0 0.0
    %593 = vmatprep.subr.mxu0 0.0
    %594 = vmatpush2.msra.mxu0 0.0
    %595 = vmatprep.subr.mxu0 0.0
    %596 = vmatpush2.msra.mxu0 0.0
    %597 = vmatprep.subr.mxu0 0.0
    %598 = vmatpush2.msra.mxu0 0.0
    %599 = vmatprep.subr.mxu0 0.0
    %600 = vmatpush2.msra.mxu0 0.0
    %601 = vmatprep.subr.mxu0 0.0
    %602 = vmatpush2.msra.mxu0 0.0
    %603 = vmatprep.subr.mxu0 0.0
    %604 = vmatpush2.msra.mxu0 0.0
    %605 = vmatprep.subr.mxu0 0.0
    %606 = vmatpush2.msra.mxu0 0.0
    %607 = vmatprep.subr.mxu0 0.0
    %608 = vmatpush2.msra.mxu0 0.0
    %609 = vmatprep.mubr.f32.mxu0 0.0
    %610 = vmatmul.mubr.f32.gmra.mxu0 %v333
    %v611 = vpop.f32.mrf.mxu0
    %v612 = vadd.f32 0.0, %v611
    %v613 = vpop.f32.mrf.mxu0
    %614 = vdwg.mxu0
    %v615 = vld [vmem:[%s1] sm:$0xff]
    %v616 = vld [vmem:[%s1 + $0x8] sm:$0xff]
    %v617 = vld [vmem:[%s1 + $0x10] sm:$0xff]
    %v618 = vld [vmem:[%s1 + $0x18] sm:$0xff]
    %v619 = vld [vmem:[%s1 + $0x20] sm:$0xff]
    %v620 = vld [vmem:[%s1 + $0x28] sm:$0xff]
    %v621 = vld [vmem:[%s1 + $0x30] sm:$0xff]
    %v622 = vld [vmem:[%s1 + $0x38] sm:$0xff]
    %s623 = scalar_lea.vmem %s1, 64
    %v624 = vld [vmem:[%s623] sm:$0xff]
    %v625 = vld [vmem:[%s623 + $0x8] sm:$0xff]
    %v626 = vld [vmem:[%s623 + $0x10] sm:$0xff]
    %v627 = vld [vmem:[%s623 + $0x18] sm:$0xff]
    %v628 = vld [vmem:[%s623 + $0x20] sm:$0xff]
    %v629 = vld [vmem:[%s623 + $0x28] sm:$0xff]
    %v630 = vld [vmem:[%s623 + $0x30] sm:$0xff]
    %v631 = vld [vmem:[%s623 + $0x38] sm:$0xff]
    %633 = vrot.lane.b32.xlu0 %v119, 120
    %v634 = vpop.permute.xlu0 %633
    %vm635 = vcmask 64512
    %v636 = vsel %vm635, %v119, 0
    %v638 = vsel %vm635, %v634, 0
    %640 = vmatprep.subr.mxu0 0.0
    %641 = vmatpush1.xpose.msra.mxu0 0.0
    %642 = vmatprep.subr.mxu0 0.0
    %643 = vmatpush1.xpose.msra.mxu0 0.0
    %644 = vmatprep.subr.mxu0 0.0
    %645 = vmatpush1.xpose.msra.mxu0 0.0
    %646 = vmatprep.subr.mxu0 0.0
    %647 = vmatpush1.xpose.msra.mxu0 0.0
    %648 = vmatprep.subr.mxu0 0.0
    %649 = vmatpush1.xpose.msra.mxu0 0.0
    %650 = vmatprep.subr.mxu0 0.0
    %651 = vmatpush1.xpose.msra.mxu0 0.0
    %652 = vmatprep.subr.mxu0 0.0
    %653 = vmatpush1.xpose.msra.mxu0 0.0
    %654 = vmatprep.subr.mxu0 0.0
    %655 = vmatpush1.xpose.msra.mxu0 0.0
    %656 = vmatprep.subr.mxu0 0.0
    %657 = vmatpush1.xpose.msra.mxu0 0.0
    %658 = vmatprep.subr.mxu0 0.0
    %659 = vmatpush1.xpose.msra.mxu0 0.0
    %660 = vmatprep.subr.mxu0 0.0
    %661 = vmatpush1.xpose.msra.mxu0 0.0
    %662 = vmatprep.subr.mxu0 0.0
    %663 = vmatpush1.xpose.msra.mxu0 0.0
    %664 = vmatprep.subr.mxu0 0.0
    %665 = vmatpush1.xpose.msra.mxu0 0.0
    %666 = vmatprep.subr.mxu0 0.0
    %667 = vmatpush1.xpose.msra.mxu0 0.0
    %668 = vmatprep.subr.mxu0 0.0
    %669 = vmatpush1.xpose.msra.mxu0 0.0
    %670 = vmatprep.subr.mxu0 0.0
    %671 = vmatpush1.xpose.msra.mxu0 %v638
    %672 = vmatprep.subr.mxu0 0.0
    %673 = vmatpush2.xpose.msra.mxu0 0.0
    %674 = vmatprep.subr.mxu0 0.0
    %675 = vmatpush2.xpose.msra.mxu0 0.0
    %676 = vmatprep.subr.mxu0 0.0
    %677 = vmatpush2.xpose.msra.mxu0 0.0
    %678 = vmatprep.subr.mxu0 0.0
    %679 = vmatpush2.xpose.msra.mxu0 0.0
    %680 = vmatprep.subr.mxu0 0.0
    %681 = vmatpush2.xpose.msra.mxu0 0.0
    %682 = vmatprep.subr.mxu0 0.0
    %683 = vmatpush2.xpose.msra.mxu0 0.0
    %684 = vmatprep.subr.mxu0 0.0
    %685 = vmatpush2.xpose.msra.mxu0 0.0
    %686 = vmatprep.subr.mxu0 0.0
    %687 = vmatpush2.xpose.msra.mxu0 0.0
    %688 = vmatprep.subr.mxu0 0.0
    %689 = vmatpush2.xpose.msra.mxu0 0.0
    %690 = vmatprep.subr.mxu0 0.0
    %691 = vmatpush2.xpose.msra.mxu0 0.0
    %692 = vmatprep.subr.mxu0 0.0
    %693 = vmatpush2.xpose.msra.mxu0 0.0
    %694 = vmatprep.subr.mxu0 0.0
    %695 = vmatpush2.xpose.msra.mxu0 0.0
    %696 = vmatprep.subr.mxu0 0.0
    %697 = vmatpush2.xpose.msra.mxu0 0.0
    %698 = vmatprep.subr.mxu0 0.0
    %699 = vmatpush2.xpose.msra.mxu0 0.0
    %700 = vmatprep.subr.mxu0 0.0
    %701 = vmatpush2.xpose.msra.mxu0 0.0
    %702 = vmatprep.subr.mxu0 0.0
    %703 = vmatpush2.xpose.msra.mxu0 0.0
    %704 = vmatprep.mubr.f32.mxu0 0.0
    %705 = vmatmul.mubr.f32.gmra.mxu0 %v636
    %v706 = vpop.f32.mrf.mxu0
    %v707 = vadd.f32 0.0, %v706
    %v708 = vpop.f32.mrf.mxu0
    %709 = vdwg.mxu0
    %711 = vrot.lane.b32.xlu0 %v189, 120
    %v712 = vpop.permute.xlu0 %711
    %v713 = vsel %vm635, %v189, 0
    %v715 = vsel %vm635, %v712, 0
    %717 = vmatprep.subr.mxu0 0.0
    %718 = vmatpush1.xpose.msra.mxu0 0.0
    %719 = vmatprep.subr.mxu0 0.0
    %720 = vmatpush1.xpose.msra.mxu0 0.0
    %721 = vmatprep.subr.mxu0 0.0
    %722 = vmatpush1.xpose.msra.mxu0 0.0
    %723 = vmatprep.subr.mxu0 0.0
    %724 = vmatpush1.xpose.msra.mxu0 0.0
    %725 = vmatprep.subr.mxu0 0.0
    %726 = vmatpush1.xpose.msra.mxu0 0.0
    %727 = vmatprep.subr.mxu0 0.0
    %728 = vmatpush1.xpose.msra.mxu0 0.0
    %729 = vmatprep.subr.mxu0 0.0
    %730 = vmatpush1.xpose.msra.mxu0 0.0
    %731 = vmatprep.subr.mxu0 0.0
    %732 = vmatpush1.xpose.msra.mxu0 0.0
    %733 = vmatprep.subr.mxu0 0.0
    %734 = vmatpush1.xpose.msra.mxu0 0.0
    %735 = vmatprep.subr.mxu0 0.0
    %736 = vmatpush1.xpose.msra.mxu0 0.0
    %737 = vmatprep.subr.mxu0 0.0
    %738 = vmatpush1.xpose.msra.mxu0 0.0
    %739 = vmatprep.subr.mxu0 0.0
    %740 = vmatpush1.xpose.msra.mxu0 0.0
    %741 = vmatprep.subr.mxu0 0.0
    %742 = vmatpush1.xpose.msra.mxu0 0.0
    %743 = vmatprep.subr.mxu0 0.0
    %744 = vmatpush1.xpose.msra.mxu0 0.0
    %745 = vmatprep.subr.mxu0 0.0
    %746 = vmatpush1.xpose.msra.mxu0 0.0
    %747 = vmatprep.subr.mxu0 0.0
    %748 = vmatpush1.xpose.msra.mxu0 %v715
    %749 = vmatprep.subr.mxu0 0.0
    %750 = vmatpush2.xpose.msra.mxu0 0.0
    %751 = vmatprep.subr.mxu0 0.0
    %752 = vmatpush2.xpose.msra.mxu0 0.0
    %753 = vmatprep.subr.mxu0 0.0
    %754 = vmatpush2.xpose.msra.mxu0 0.0
    %755 = vmatprep.subr.mxu0 0.0
    %756 = vmatpush2.xpose.msra.mxu0 0.0
    %757 = vmatprep.subr.mxu0 0.0
    %758 = vmatpush2.xpose.msra.mxu0 0.0
    %759 = vmatprep.subr.mxu0 0.0
    %760 = vmatpush2.xpose.msra.mxu0 0.0
    %761 = vmatprep.subr.mxu0 0.0
    %762 = vmatpush2.xpose.msra.mxu0 0.0
    %763 = vmatprep.subr.mxu0 0.0
    %764 = vmatpush2.xpose.msra.mxu0 0.0
    %765 = vmatprep.subr.mxu0 0.0
    %766 = vmatpush2.xpose.msra.mxu0 0.0
    %767 = vmatprep.subr.mxu0 0.0
    %768 = vmatpush2.xpose.msra.mxu0 0.0
    %769 = vmatprep.subr.mxu0 0.0
    %770 = vmatpush2.xpose.msra.mxu0 0.0
    %771 = vmatprep.subr.mxu0 0.0
    %772 = vmatpush2.xpose.msra.mxu0 0.0
    %773 = vmatprep.subr.mxu0 0.0
    %774 = vmatpush2.xpose.msra.mxu0 0.0
    %775 = vmatprep.subr.mxu0 0.0
    %776 = vmatpush2.xpose.msra.mxu0 0.0
    %777 = vmatprep.subr.mxu0 0.0
    %778 = vmatpush2.xpose.msra.mxu0 0.0
    %779 = vmatprep.subr.mxu0 0.0
    %780 = vmatpush2.xpose.msra.mxu0 0.0
    %781 = vmatprep.mubr.f32.mxu0 0.0
    %782 = vmatmul.mubr.f32.gmra.mxu0 %v713
    %v783 = vpop.f32.mrf.mxu0
    %v784 = vadd.f32 0.0, %v783
    %v785 = vpop.f32.mrf.mxu0
    %786 = vdwg.mxu0
    %788 = vrot.lane.b32.xlu0 %v259, 120
    %v789 = vpop.permute.xlu0 %788
    %v790 = vsel %vm635, %v259, 0
    %v792 = vsel %vm635, %v789, 0
    %794 = vmatprep.subr.mxu0 0.0
    %795 = vmatpush1.xpose.msra.mxu0 0.0
    %796 = vmatprep.subr.mxu0 0.0
    %797 = vmatpush1.xpose.msra.mxu0 0.0
    %798 = vmatprep.subr.mxu0 0.0
    %799 = vmatpush1.xpose.msra.mxu0 0.0
    %800 = vmatprep.subr.mxu0 0.0
    %801 = vmatpush1.xpose.msra.mxu0 0.0
    %802 = vmatprep.subr.mxu0 0.0
    %803 = vmatpush1.xpose.msra.mxu0 0.0
    %804 = vmatprep.subr.mxu0 0.0
    %805 = vmatpush1.xpose.msra.mxu0 0.0
    %806 = vmatprep.subr.mxu0 0.0
    %807 = vmatpush1.xpose.msra.mxu0 0.0
    %808 = vmatprep.subr.mxu0 0.0
    %809 = vmatpush1.xpose.msra.mxu0 0.0
    %810 = vmatprep.subr.mxu0 0.0
    %811 = vmatpush1.xpose.msra.mxu0 0.0
    %812 = vmatprep.subr.mxu0 0.0
    %813 = vmatpush1.xpose.msra.mxu0 0.0
    %814 = vmatprep.subr.mxu0 0.0
    %815 = vmatpush1.xpose.msra.mxu0 0.0
    %816 = vmatprep.subr.mxu0 0.0
    %817 = vmatpush1.xpose.msra.mxu0 0.0
    %818 = vmatprep.subr.mxu0 0.0
    %819 = vmatpush1.xpose.msra.mxu0 0.0
    %820 = vmatprep.subr.mxu0 0.0
    %821 = vmatpush1.xpose.msra.mxu0 0.0
    %822 = vmatprep.subr.mxu0 0.0
    %823 = vmatpush1.xpose.msra.mxu0 0.0
    %824 = vmatprep.subr.mxu0 0.0
    %825 = vmatpush1.xpose.msra.mxu0 %v792
    %826 = vmatprep.subr.mxu0 0.0
    %827 = vmatpush2.xpose.msra.mxu0 0.0
    %828 = vmatprep.subr.mxu0 0.0
    %829 = vmatpush2.xpose.msra.mxu0 0.0
    %830 = vmatprep.subr.mxu0 0.0
    %831 = vmatpush2.xpose.msra.mxu0 0.0
    %832 = vmatprep.subr.mxu0 0.0
    %833 = vmatpush2.xpose.msra.mxu0 0.0
    %834 = vmatprep.subr.mxu0 0.0
    %835 = vmatpush2.xpose.msra.mxu0 0.0
    %836 = vmatprep.subr.mxu0 0.0
    %837 = vmatpush2.xpose.msra.mxu0 0.0
    %838 = vmatprep.subr.mxu0 0.0
    %839 = vmatpush2.xpose.msra.mxu0 0.0
    %840 = vmatprep.subr.mxu0 0.0
    %841 = vmatpush2.xpose.msra.mxu0 0.0
    %842 = vmatprep.subr.mxu0 0.0
    %843 = vmatpush2.xpose.msra.mxu0 0.0
    %844 = vmatprep.subr.mxu0 0.0
    %845 = vmatpush2.xpose.msra.mxu0 0.0
    %846 = vmatprep.subr.mxu0 0.0
    %847 = vmatpush2.xpose.msra.mxu0 0.0
    %848 = vmatprep.subr.mxu0 0.0
    %849 = vmatpush2.xpose.msra.mxu0 0.0
    %850 = vmatprep.subr.mxu0 0.0
    %851 = vmatpush2.xpose.msra.mxu0 0.0
    %852 = vmatprep.subr.mxu0 0.0
    %853 = vmatpush2.xpose.msra.mxu0 0.0
    %854 = vmatprep.subr.mxu0 0.0
    %855 = vmatpush2.xpose.msra.mxu0 0.0
    %856 = vmatprep.subr.mxu0 0.0
    %857 = vmatpush2.xpose.msra.mxu0 0.0
    %858 = vmatprep.mubr.f32.mxu0 0.0
    %859 = vmatmul.mubr.f32.gmra.mxu0 %v790
    %v860 = vpop.f32.mrf.mxu0
    %v861 = vadd.f32 0.0, %v860
    %v862 = vpop.f32.mrf.mxu0
    %863 = vdwg.mxu0
    %865 = vrot.lane.b32.xlu0 %v329, 120
    %v866 = vpop.permute.xlu0 %865
    %v867 = vsel %vm635, %v329, 0
    %v869 = vsel %vm635, %v866, 0
    %871 = vmatprep.subr.mxu0 0.0
    %872 = vmatpush1.xpose.msra.mxu0 0.0
    %873 = vmatprep.subr.mxu0 0.0
    %874 = vmatpush1.xpose.msra.mxu0 0.0
    %875 = vmatprep.subr.mxu0 0.0
    %876 = vmatpush1.xpose.msra.mxu0 0.0
    %877 = vmatprep.subr.mxu0 0.0
    %878 = vmatpush1.xpose.msra.mxu0 0.0
    %879 = vmatprep.subr.mxu0 0.0
    %880 = vmatpush1.xpose.msra.mxu0 0.0
    %881 = vmatprep.subr.mxu0 0.0
    %882 = vmatpush1.xpose.msra.mxu0 0.0
    %883 = vmatprep.subr.mxu0 0.0
    %884 = vmatpush1.xpose.msra.mxu0 0.0
    %885 = vmatprep.subr.mxu0 0.0
    %886 = vmatpush1.xpose.msra.mxu0 0.0
    %887 = vmatprep.subr.mxu0 0.0
    %888 = vmatpush1.xpose.msra.mxu0 0.0
    %889 = vmatprep.subr.mxu0 0.0
    %890 = vmatpush1.xpose.msra.mxu0 0.0
    %891 = vmatprep.subr.mxu0 0.0
    %892 = vmatpush1.xpose.msra.mxu0 0.0
    %893 = vmatprep.subr.mxu0 0.0
    %894 = vmatpush1.xpose.msra.mxu0 0.0
    %895 = vmatprep.subr.mxu0 0.0
    %896 = vmatpush1.xpose.msra.mxu0 0.0
    %897 = vmatprep.subr.mxu0 0.0
    %898 = vmatpush1.xpose.msra.mxu0 0.0
    %899 = vmatprep.subr.mxu0 0.0
    %900 = vmatpush1.xpose.msra.mxu0 0.0
    %901 = vmatprep.subr.mxu0 0.0
    %902 = vmatpush1.xpose.msra.mxu0 %v869
    %903 = vmatprep.subr.mxu0 0.0
    %904 = vmatpush2.xpose.msra.mxu0 0.0
    %905 = vmatprep.subr.mxu0 0.0
    %906 = vmatpush2.xpose.msra.mxu0 0.0
    %907 = vmatprep.subr.mxu0 0.0
    %908 = vmatpush2.xpose.msra.mxu0 0.0
    %909 = vmatprep.subr.mxu0 0.0
    %910 = vmatpush2.xpose.msra.mxu0 0.0
    %911 = vmatprep.subr.mxu0 0.0
    %912 = vmatpush2.xpose.msra.mxu0 0.0
    %913 = vmatprep.subr.mxu0 0.0
    %914 = vmatpush2.xpose.msra.mxu0 0.0
    %915 = vmatprep.subr.mxu0 0.0
    %916 = vmatpush2.xpose.msra.mxu0 0.0
    %917 = vmatprep.subr.mxu0 0.0
    %918 = vmatpush2.xpose.msra.mxu0 0.0
    %919 = vmatprep.subr.mxu0 0.0
    %920 = vmatpush2.xpose.msra.mxu0 0.0
    %921 = vmatprep.subr.mxu0 0.0
    %922 = vmatpush2.xpose.msra.mxu0 0.0
    %923 = vmatprep.subr.mxu0 0.0
    %924 = vmatpush2.xpose.msra.mxu0 0.0
    %925 = vmatprep.subr.mxu0 0.0
    %926 = vmatpush2.xpose.msra.mxu0 0.0
    %927 = vmatprep.subr.mxu0 0.0
    %928 = vmatpush2.xpose.msra.mxu0 0.0
    %929 = vmatprep.subr.mxu0 0.0
    %930 = vmatpush2.xpose.msra.mxu0 0.0
    %931 = vmatprep.subr.mxu0 0.0
    %932 = vmatpush2.xpose.msra.mxu0 0.0
    %933 = vmatprep.subr.mxu0 0.0
    %934 = vmatpush2.xpose.msra.mxu0 0.0
    %935 = vmatprep.mubr.f32.mxu0 0.0
    %936 = vmatmul.mubr.f32.gmra.mxu0 %v867
    %v937 = vpop.f32.mrf.mxu0
    %v938 = vadd.f32 0.0, %v937
    %v939 = vpop.f32.mrf.mxu0
    %940 = vdwg.mxu0
    %942 = vrot.lane.b32.xlu0 %v402, 120
    %v943 = vpop.permute.xlu0 %942
    %v944 = vsel %vm635, %v402, 0
    %v946 = vsel %vm635, %v943, 0
    %948 = vmatprep.subr.mxu0 0.0
    %949 = vmatpush1.xpose.msra.mxu0 0.0
    %950 = vmatprep.subr.mxu0 0.0
    %951 = vmatpush1.xpose.msra.mxu0 0.0
    %952 = vmatprep.subr.mxu0 0.0
    %953 = vmatpush1.xpose.msra.mxu0 0.0
    %954 = vmatprep.subr.mxu0 0.0
    %955 = vmatpush1.xpose.msra.mxu0 0.0
    %956 = vmatprep.subr.mxu0 0.0
    %957 = vmatpush1.xpose.msra.mxu0 0.0
    %958 = vmatprep.subr.mxu0 0.0
    %959 = vmatpush1.xpose.msra.mxu0 0.0
    %960 = vmatprep.subr.mxu0 0.0
    %961 = vmatpush1.xpose.msra.mxu0 0.0
    %962 = vmatprep.subr.mxu0 0.0
    %963 = vmatpush1.xpose.msra.mxu0 0.0
    %964 = vmatprep.subr.mxu0 0.0
    %965 = vmatpush1.xpose.msra.mxu0 0.0
    %966 = vmatprep.subr.mxu0 0.0
    %967 = vmatpush1.xpose.msra.mxu0 0.0
    %968 = vmatprep.subr.mxu0 0.0
    %969 = vmatpush1.xpose.msra.mxu0 0.0
    %970 = vmatprep.subr.mxu0 0.0
    %971 = vmatpush1.xpose.msra.mxu0 0.0
    %972 = vmatprep.subr.mxu0 0.0
    %973 = vmatpush1.xpose.msra.mxu0 0.0
    %974 = vmatprep.subr.mxu0 0.0
    %975 = vmatpush1.xpose.msra.mxu0 0.0
    %976 = vmatprep.subr.mxu0 0.0
    %977 = vmatpush1.xpose.msra.mxu0 0.0
    %978 = vmatprep.subr.mxu0 0.0
    %979 = vmatpush1.xpose.msra.mxu0 %v946
    %980 = vmatprep.subr.mxu0 0.0
    %981 = vmatpush2.xpose.msra.mxu0 0.0
    %982 = vmatprep.subr.mxu0 0.0
    %983 = vmatpush2.xpose.msra.mxu0 0.0
    %984 = vmatprep.subr.mxu0 0.0
    %985 = vmatpush2.xpose.msra.mxu0 0.0
    %986 = vmatprep.subr.mxu0 0.0
    %987 = vmatpush2.xpose.msra.mxu0 0.0
    %988 = vmatprep.subr.mxu0 0.0
    %989 = vmatpush2.xpose.msra.mxu0 0.0
    %990 = vmatprep.subr.mxu0 0.0
    %991 = vmatpush2.xpose.msra.mxu0 0.0
    %992 = vmatprep.subr.mxu0 0.0
    %993 = vmatpush2.xpose.msra.mxu0 0.0
    %994 = vmatprep.subr.mxu0 0.0
    %995 = vmatpush2.xpose.msra.mxu0 0.0
    %996 = vmatprep.subr.mxu0 0.0
    %997 = vmatpush2.xpose.msra.mxu0 0.0
    %998 = vmatprep.subr.mxu0 0.0
    %999 = vmatpush2.xpose.msra.mxu0 0.0
    %1000 = vmatprep.subr.mxu0 0.0
    %1001 = vmatpush2.xpose.msra.mxu0 0.0
    %1002 = vmatprep.subr.mxu0 0.0
    %1003 = vmatpush2.xpose.msra.mxu0 0.0
    %1004 = vmatprep.subr.mxu0 0.0
    %1005 = vmatpush2.xpose.msra.mxu0 0.0
    %1006 = vmatprep.subr.mxu0 0.0
    %1007 = vmatpush2.xpose.msra.mxu0 0.0
    %1008 = vmatprep.subr.mxu0 0.0
    %1009 = vmatpush2.xpose.msra.mxu0 0.0
    %1010 = vmatprep.subr.mxu0 0.0
    %1011 = vmatpush2.xpose.msra.mxu0 0.0
    %1012 = vmatprep.mubr.f32.mxu0 0.0
    %1013 = vmatmul.mubr.f32.gmra.mxu0 %v944
    %v1014 = vpop.f32.mrf.mxu0
    %v1015 = vadd.f32 0.0, %v1014
    %v1016 = vpop.f32.mrf.mxu0
    %1017 = vdwg.mxu0
    %1019 = vrot.lane.b32.xlu0 %v472, 120
    %v1020 = vpop.permute.xlu0 %1019
    %v1021 = vsel %vm635, %v472, 0
    %v1023 = vsel %vm635, %v1020, 0
    %1025 = vmatprep.subr.mxu0 0.0
    %1026 = vmatpush1.xpose.msra.mxu0 0.0
    %1027 = vmatprep.subr.mxu0 0.0
    %1028 = vmatpush1.xpose.msra.mxu0 0.0
    %1029 = vmatprep.subr.mxu0 0.0
    %1030 = vmatpush1.xpose.msra.mxu0 0.0
    %1031 = vmatprep.subr.mxu0 0.0
    %1032 = vmatpush1.xpose.msra.mxu0 0.0
    %1033 = vmatprep.subr.mxu0 0.0
    %1034 = vmatpush1.xpose.msra.mxu0 0.0
    %1035 = vmatprep.subr.mxu0 0.0
    %1036 = vmatpush1.xpose.msra.mxu0 0.0
    %1037 = vmatprep.subr.mxu0 0.0
    %1038 = vmatpush1.xpose.msra.mxu0 0.0
    %1039 = vmatprep.subr.mxu0 0.0
    %1040 = vmatpush1.xpose.msra.mxu0 0.0
    %1041 = vmatprep.subr.mxu0 0.0
    %1042 = vmatpush1.xpose.msra.mxu0 0.0
    %1043 = vmatprep.subr.mxu0 0.0
    %1044 = vmatpush1.xpose.msra.mxu0 0.0
    %1045 = vmatprep.subr.mxu0 0.0
    %1046 = vmatpush1.xpose.msra.mxu0 0.0
    %1047 = vmatprep.subr.mxu0 0.0
    %1048 = vmatpush1.xpose.msra.mxu0 0.0
    %1049 = vmatprep.subr.mxu0 0.0
    %1050 = vmatpush1.xpose.msra.mxu0 0.0
    %1051 = vmatprep.subr.mxu0 0.0
    %1052 = vmatpush1.xpose.msra.mxu0 0.0
    %1053 = vmatprep.subr.mxu0 0.0
    %1054 = vmatpush1.xpose.msra.mxu0 0.0
    %1055 = vmatprep.subr.mxu0 0.0
    %1056 = vmatpush1.xpose.msra.mxu0 %v1023
    %1057 = vmatprep.subr.mxu0 0.0
    %1058 = vmatpush2.xpose.msra.mxu0 0.0
    %1059 = vmatprep.subr.mxu0 0.0
    %1060 = vmatpush2.xpose.msra.mxu0 0.0
    %1061 = vmatprep.subr.mxu0 0.0
    %1062 = vmatpush2.xpose.msra.mxu0 0.0
    %1063 = vmatprep.subr.mxu0 0.0
    %1064 = vmatpush2.xpose.msra.mxu0 0.0
    %1065 = vmatprep.subr.mxu0 0.0
    %1066 = vmatpush2.xpose.msra.mxu0 0.0
    %1067 = vmatprep.subr.mxu0 0.0
    %1068 = vmatpush2.xpose.msra.mxu0 0.0
    %1069 = vmatprep.subr.mxu0 0.0
    %1070 = vmatpush2.xpose.msra.mxu0 0.0
    %1071 = vmatprep.subr.mxu0 0.0
    %1072 = vmatpush2.xpose.msra.mxu0 0.0
    %1073 = vmatprep.subr.mxu0 0.0
    %1074 = vmatpush2.xpose.msra.mxu0 0.0
    %1075 = vmatprep.subr.mxu0 0.0
    %1076 = vmatpush2.xpose.msra.mxu0 0.0
    %1077 = vmatprep.subr.mxu0 0.0
    %1078 = vmatpush2.xpose.msra.mxu0 0.0
    %1079 = vmatprep.subr.mxu0 0.0
    %1080 = vmatpush2.xpose.msra.mxu0 0.0
    %1081 = vmatprep.subr.mxu0 0.0
    %1082 = vmatpush2.xpose.msra.mxu0 0.0
    %1083 = vmatprep.subr.mxu0 0.0
    %1084 = vmatpush2.xpose.msra.mxu0 0.0
    %1085 = vmatprep.subr.mxu0 0.0
    %1086 = vmatpush2.xpose.msra.mxu0 0.0
    %1087 = vmatprep.subr.mxu0 0.0
    %1088 = vmatpush2.xpose.msra.mxu0 0.0
    %1089 = vmatprep.mubr.f32.mxu0 0.0
    %1090 = vmatmul.mubr.f32.gmra.mxu0 %v1021
    %v1091 = vpop.f32.mrf.mxu0
    %v1092 = vadd.f32 0.0, %v1091
    %v1093 = vpop.f32.mrf.mxu0
    %1094 = vdwg.mxu0
    %1096 = vrot.lane.b32.xlu0 %v542, 120
    %v1097 = vpop.permute.xlu0 %1096
    %v1098 = vsel %vm635, %v542, 0
    %v1100 = vsel %vm635, %v1097, 0
    %1102 = vmatprep.subr.mxu0 0.0
    %1103 = vmatpush1.xpose.msra.mxu0 0.0
    %1104 = vmatprep.subr.mxu0 0.0
    %1105 = vmatpush1.xpose.msra.mxu0 0.0
    %1106 = vmatprep.subr.mxu0 0.0
    %1107 = vmatpush1.xpose.msra.mxu0 0.0
    %1108 = vmatprep.subr.mxu0 0.0
    %1109 = vmatpush1.xpose.msra.mxu0 0.0
    %1110 = vmatprep.subr.mxu0 0.0
    %1111 = vmatpush1.xpose.msra.mxu0 0.0
    %1112 = vmatprep.subr.mxu0 0.0
    %1113 = vmatpush1.xpose.msra.mxu0 0.0
    %1114 = vmatprep.subr.mxu0 0.0
    %1115 = vmatpush1.xpose.msra.mxu0 0.0
    %1116 = vmatprep.subr.mxu0 0.0
    %1117 = vmatpush1.xpose.msra.mxu0 0.0
    %1118 = vmatprep.subr.mxu0 0.0
    %1119 = vmatpush1.xpose.msra.mxu0 0.0
    %1120 = vmatprep.subr.mxu0 0.0
    %1121 = vmatpush1.xpose.msra.mxu0 0.0
    %1122 = vmatprep.subr.mxu0 0.0
    %1123 = vmatpush1.xpose.msra.mxu0 0.0
    %1124 = vmatprep.subr.mxu0 0.0
    %1125 = vmatpush1.xpose.msra.mxu0 0.0
    %1126 = vmatprep.subr.mxu0 0.0
    %1127 = vmatpush1.xpose.msra.mxu0 0.0
    %1128 = vmatprep.subr.mxu0 0.0
    %1129 = vmatpush1.xpose.msra.mxu0 0.0
    %1130 = vmatprep.subr.mxu0 0.0
    %1131 = vmatpush1.xpose.msra.mxu0 0.0
    %1132 = vmatprep.subr.mxu0 0.0
    %1133 = vmatpush1.xpose.msra.mxu0 %v1100
    %1134 = vmatprep.subr.mxu0 0.0
    %1135 = vmatpush2.xpose.msra.mxu0 0.0
    %1136 = vmatprep.subr.mxu0 0.0
    %1137 = vmatpush2.xpose.msra.mxu0 0.0
    %1138 = vmatprep.subr.mxu0 0.0
    %1139 = vmatpush2.xpose.msra.mxu0 0.0
    %1140 = vmatprep.subr.mxu0 0.0
    %1141 = vmatpush2.xpose.msra.mxu0 0.0
    %1142 = vmatprep.subr.mxu0 0.0
    %1143 = vmatpush2.xpose.msra.mxu0 0.0
    %1144 = vmatprep.subr.mxu0 0.0
    %1145 = vmatpush2.xpose.msra.mxu0 0.0
    %1146 = vmatprep.subr.mxu0 0.0
    %1147 = vmatpush2.xpose.msra.mxu0 0.0
    %1148 = vmatprep.subr.mxu0 0.0
    %1149 = vmatpush2.xpose.msra.mxu0 0.0
    %1150 = vmatprep.subr.mxu0 0.0
    %1151 = vmatpush2.xpose.msra.mxu0 0.0
    %1152 = vmatprep.subr.mxu0 0.0
    %1153 = vmatpush2.xpose.msra.mxu0 0.0
    %1154 = vmatprep.subr.mxu0 0.0
    %1155 = vmatpush2.xpose.msra.mxu0 0.0
    %1156 = vmatprep.subr.mxu0 0.0
    %1157 = vmatpush2.xpose.msra.mxu0 0.0
    %1158 = vmatprep.subr.mxu0 0.0
    %1159 = vmatpush2.xpose.msra.mxu0 0.0
    %1160 = vmatprep.subr.mxu0 0.0
    %1161 = vmatpush2.xpose.msra.mxu0 0.0
    %1162 = vmatprep.subr.mxu0 0.0
    %1163 = vmatpush2.xpose.msra.mxu0 0.0
    %1164 = vmatprep.subr.mxu0 0.0
    %1165 = vmatpush2.xpose.msra.mxu0 0.0
    %1166 = vmatprep.mubr.f32.mxu0 0.0
    %1167 = vmatmul.mubr.f32.gmra.mxu0 %v1098
    %v1168 = vpop.f32.mrf.mxu0
    %v1169 = vadd.f32 0.0, %v1168
    %v1170 = vpop.f32.mrf.mxu0
    %1171 = vdwg.mxu0
    %1173 = vrot.lane.b32.xlu0 %v612, 120
    %v1174 = vpop.permute.xlu0 %1173
    %v1175 = vsel %vm635, %v612, 0
    %v1177 = vsel %vm635, %v1174, 0
    %1179 = vmatprep.subr.mxu0 0.0
    %1180 = vmatpush1.xpose.msra.mxu0 0.0
    %1181 = vmatprep.subr.mxu0 0.0
    %1182 = vmatpush1.xpose.msra.mxu0 0.0
    %1183 = vmatprep.subr.mxu0 0.0
    %1184 = vmatpush1.xpose.msra.mxu0 0.0
    %1185 = vmatprep.subr.mxu0 0.0
    %1186 = vmatpush1.xpose.msra.mxu0 0.0
    %1187 = vmatprep.subr.mxu0 0.0
    %1188 = vmatpush1.xpose.msra.mxu0 0.0
    %1189 = vmatprep.subr.mxu0 0.0
    %1190 = vmatpush1.xpose.msra.mxu0 0.0
    %1191 = vmatprep.subr.mxu0 0.0
    %1192 = vmatpush1.xpose.msra.mxu0 0.0
    %1193 = vmatprep.subr.mxu0 0.0
    %1194 = vmatpush1.xpose.msra.mxu0 0.0
    %1195 = vmatprep.subr.mxu0 0.0
    %1196 = vmatpush1.xpose.msra.mxu0 0.0
    %1197 = vmatprep.subr.mxu0 0.0
    %1198 = vmatpush1.xpose.msra.mxu0 0.0
    %1199 = vmatprep.subr.mxu0 0.0
    %1200 = vmatpush1.xpose.msra.mxu0 0.0
    %1201 = vmatprep.subr.mxu0 0.0
    %1202 = vmatpush1.xpose.msra.mxu0 0.0
    %1203 = vmatprep.subr.mxu0 0.0
    %1204 = vmatpush1.xpose.msra.mxu0 0.0
    %1205 = vmatprep.subr.mxu0 0.0
    %1206 = vmatpush1.xpose.msra.mxu0 0.0
    %1207 = vmatprep.subr.mxu0 0.0
    %1208 = vmatpush1.xpose.msra.mxu0 0.0
    %1209 = vmatprep.subr.mxu0 0.0
    %1210 = vmatpush1.xpose.msra.mxu0 %v1177
    %1211 = vmatprep.subr.mxu0 0.0
    %1212 = vmatpush2.xpose.msra.mxu0 0.0
    %1213 = vmatprep.subr.mxu0 0.0
    %1214 = vmatpush2.xpose.msra.mxu0 0.0
    %1215 = vmatprep.subr.mxu0 0.0
    %1216 = vmatpush2.xpose.msra.mxu0 0.0
    %1217 = vmatprep.subr.mxu0 0.0
    %1218 = vmatpush2.xpose.msra.mxu0 0.0
    %1219 = vmatprep.subr.mxu0 0.0
    %1220 = vmatpush2.xpose.msra.mxu0 0.0
    %1221 = vmatprep.subr.mxu0 0.0
    %1222 = vmatpush2.xpose.msra.mxu0 0.0
    %1223 = vmatprep.subr.mxu0 0.0
    %1224 = vmatpush2.xpose.msra.mxu0 0.0
    %1225 = vmatprep.subr.mxu0 0.0
    %1226 = vmatpush2.xpose.msra.mxu0 0.0
    %1227 = vmatprep.subr.mxu0 0.0
    %1228 = vmatpush2.xpose.msra.mxu0 0.0
    %1229 = vmatprep.subr.mxu0 0.0
    %1230 = vmatpush2.xpose.msra.mxu0 0.0
    %1231 = vmatprep.subr.mxu0 0.0
    %1232 = vmatpush2.xpose.msra.mxu0 0.0
    %1233 = vmatprep.subr.mxu0 0.0
    %1234 = vmatpush2.xpose.msra.mxu0 0.0
    %1235 = vmatprep.subr.mxu0 0.0
    %1236 = vmatpush2.xpose.msra.mxu0 0.0
    %1237 = vmatprep.subr.mxu0 0.0
    %1238 = vmatpush2.xpose.msra.mxu0 0.0
    %1239 = vmatprep.subr.mxu0 0.0
    %1240 = vmatpush2.xpose.msra.mxu0 0.0
    %1241 = vmatprep.subr.mxu0 0.0
    %1242 = vmatpush2.xpose.msra.mxu0 0.0
    %1243 = vmatprep.mubr.f32.mxu0 0.0
    %1244 = vmatmul.mubr.f32.gmra.mxu0 %v1175
    %v1245 = vpop.f32.mrf.mxu0
    %v1246 = vadd.f32 0.0, %v1245
    %v1247 = vpop.f32.mrf.mxu0
    %1248 = vdwg.mxu0
    %v1249 = vmul.f32 %v707, 0.35355338
    %v1250 = vmul.f32 %v784, 0.35355338
    %v1251 = vmul.f32 %v861, 0.35355338
    %v1252 = vmul.f32 %v938, 0.35355338
    %v1253 = vmul.f32 %v1015, 0.35355338
    %v1254 = vmul.f32 %v1092, 0.35355338
    %v1255 = vmul.f32 %v1169, 0.35355338
    %v1256 = vmul.f32 %v1246, 0.35355338
    %vm1257 = vcmp.gt.f32.partialorder %v624, 0.5
    %vm1258 = vcmp.gt.f32.partialorder %v625, 0.5
    %vm1259 = vcmp.gt.f32.partialorder %v626, 0.5
    %vm1260 = vcmp.gt.f32.partialorder %v627, 0.5
    %vm1261 = vcmp.gt.f32.partialorder %v628, 0.5
    %vm1262 = vcmp.gt.f32.partialorder %v629, 0.5
    %vm1263 = vcmp.gt.f32.partialorder %v630, 0.5
    %vm1264 = vcmp.gt.f32.partialorder %v631, 0.5
    %v1265 = vadd.f32 %v1249, %v615
    %v1266 = vadd.f32 %v1250, %v616
    %v1267 = vadd.f32 %v1251, %v617
    %v1268 = vadd.f32 %v1252, %v618
    %v1269 = vadd.f32 %v1253, %v619
    %v1270 = vadd.f32 %v1254, %v620
    %v1271 = vadd.f32 %v1255, %v621
    %v1272 = vadd.f32 %v1256, %v622
    %v1273 = vsel %vm1257, -1e+09, %v1265
    %v1274 = vsel %vm1258, -1e+09, %v1266
    %v1275 = vsel %vm1259, -1e+09, %v1267
    %v1276 = vsel %vm1260, -1e+09, %v1268
    %v1277 = vsel %vm1261, -1e+09, %v1269
    %v1278 = vsel %vm1262, -1e+09, %v1270
    %v1279 = vsel %vm1263, -1e+09, %v1271
    %v1280 = vsel %vm1264, -1e+09, %v1272
    %v1281 = vsel %vm635, %v1273, -inf
    %1282 = vmax.xlane.f32.xlu0 %v1281
    %v1283 = vpop.xlane.xlu0 %1282
    %v1284 = vsel %vm635, %v1274, -inf
    %1285 = vmax.xlane.f32.xlu0 %v1284
    %v1286 = vpop.xlane.xlu0 %1285
    %v1287 = vsel %vm635, %v1275, -inf
    %1288 = vmax.xlane.f32.xlu0 %v1287
    %v1289 = vpop.xlane.xlu0 %1288
    %v1290 = vsel %vm635, %v1276, -inf
    %1291 = vmax.xlane.f32.xlu0 %v1290
    %v1292 = vpop.xlane.xlu0 %1291
    %v1293 = vsel %vm635, %v1277, -inf
    %1294 = vmax.xlane.f32.xlu0 %v1293
    %v1295 = vpop.xlane.xlu0 %1294
    %v1296 = vsel %vm635, %v1278, -inf
    %1297 = vmax.xlane.f32.xlu0 %v1296
    %v1298 = vpop.xlane.xlu0 %1297
    %v1299 = vsel %vm635, %v1279, -inf
    %1300 = vmax.xlane.f32.xlu0 %v1299
    %v1301 = vpop.xlane.xlu0 %1300
    %v1302 = vsel %vm635, %v1280, -inf
    %1303 = vmax.xlane.f32.xlu0 %v1302
    %v1304 = vpop.xlane.xlu0 %1303
    %v1305 = vsub.f32 %v1273, %v1283
    %v1306 = vsub.f32 %v1274, %v1286
    %v1307 = vsub.f32 %v1275, %v1289
    %v1308 = vsub.f32 %v1276, %v1292
    %v1309 = vsub.f32 %v1277, %v1295
    %v1310 = vsub.f32 %v1278, %v1298
    %v1311 = vsub.f32 %v1279, %v1301
    %v1312 = vsub.f32 %v1280, %v1304
    %v1313 = vmul.f32 %v1305, 1.442695
    %v1314 = vpow.pop %v1313
    %v1315 = vmul.f32 %v1306, 1.442695
    %v1316 = vpow.pop %v1315
    %v1317 = vmul.f32 %v1307, 1.442695
    %v1318 = vpow.pop %v1317
    %v1319 = vmul.f32 %v1308, 1.442695
    %v1320 = vpow.pop %v1319
    %v1321 = vmul.f32 %v1309, 1.442695
    %v1322 = vpow.pop %v1321
    %v1323 = vmul.f32 %v1310, 1.442695
    %v1324 = vpow.pop %v1323
    %v1325 = vmul.f32 %v1311, 1.442695
    %v1326 = vpow.pop %v1325
    %v1327 = vmul.f32 %v1312, 1.442695
    %v1328 = vpow.pop %v1327
    %v1329 = vsel %vm635, %v1314, 0.0
    %1330 = vadd.xlane.f32.xlu0 %v1329
    %v1331 = vpop.xlane.xlu0 %1330
    %v1332 = vsel %vm635, %v1316, 0.0
    %1333 = vadd.xlane.f32.xlu0 %v1332
    %v1334 = vpop.xlane.xlu0 %1333
    %v1335 = vsel %vm635, %v1318, 0.0
    %1336 = vadd.xlane.f32.xlu0 %v1335
    %v1337 = vpop.xlane.xlu0 %1336
    %v1338 = vsel %vm635, %v1320, 0.0
    %1339 = vadd.xlane.f32.xlu0 %v1338
    %v1340 = vpop.xlane.xlu0 %1339
    %v1341 = vsel %vm635, %v1322, 0.0
    %1342 = vadd.xlane.f32.xlu0 %v1341
    %v1343 = vpop.xlane.xlu0 %1342
    %v1344 = vsel %vm635, %v1324, 0.0
    %1345 = vadd.xlane.f32.xlu0 %v1344
    %v1346 = vpop.xlane.xlu0 %1345
    %v1347 = vsel %vm635, %v1326, 0.0
    %1348 = vadd.xlane.f32.xlu0 %v1347
    %v1349 = vpop.xlane.xlu0 %1348
    %v1350 = vsel %vm635, %v1328, 0.0
    %1351 = vadd.xlane.f32.xlu0 %v1350
    %v1352 = vpop.xlane.xlu0 %1351
    %v1353 = vrcp.pop %v1331
    %v1354 = vmul.f32 %v1314, %v1353
    %v1355 = vrcp.pop %v1334
    %v1356 = vmul.f32 %v1316, %v1355
    %v1357 = vrcp.pop %v1337
    %v1358 = vmul.f32 %v1318, %v1357
    %v1359 = vrcp.pop %v1340
    %v1360 = vmul.f32 %v1320, %v1359
    %v1361 = vrcp.pop %v1343
    %v1362 = vmul.f32 %v1322, %v1361
    %v1363 = vrcp.pop %v1346
    %v1364 = vmul.f32 %v1324, %v1363
    %v1365 = vrcp.pop %v1349
    %v1366 = vmul.f32 %v1326, %v1365
    %v1367 = vrcp.pop %v1352
    %v1368 = vmul.f32 %v1328, %v1367
    %1369 = vst.msk [vmem:[#allocation4] sm:$0xff] %vm635, %v1354
    %1370 = vst.msk [vmem:[#allocation4 + $0x8] sm:$0xff] %vm635, %v1356
    %1371 = vst.msk [vmem:[#allocation4 + $0x10] sm:$0xff] %vm635, %v1358
    %1372 = vst.msk [vmem:[#allocation4 + $0x18] sm:$0xff] %vm635, %v1360
    %1373 = vst.msk [vmem:[#allocation4 + $0x20] sm:$0xff] %vm635, %v1362
    %1374 = vst.msk [vmem:[#allocation4 + $0x28] sm:$0xff] %vm635, %v1364
    %1375 = vst.msk [vmem:[#allocation4 + $0x30] sm:$0xff] %vm635, %v1366
    %1376 = vst.msk [vmem:[#allocation4 + $0x38] sm:$0xff] %vm635, %v1368
    %1377 = vrot.lane.b32.xlu0 %v119, 112
    %v1378 = vpop.permute.xlu0 %1377
    %v1381 = vsel %vm635, %v1354, 0
    %1383 = vmatprep.subr.mxu0 0.0
    %1384 = vmatpush1.msra.mxu0 0.0
    %1385 = vmatprep.subr.mxu0 0.0
    %1386 = vmatpush1.msra.mxu0 0.0
    %1387 = vmatprep.subr.mxu0 0.0
    %1388 = vmatpush1.msra.mxu0 0.0
    %1389 = vmatprep.subr.mxu0 0.0
    %1390 = vmatpush1.msra.mxu0 0.0
    %1391 = vmatprep.subr.mxu0 0.0
    %1392 = vmatpush1.msra.mxu0 0.0
    %1393 = vmatprep.subr.mxu0 0.0
    %1394 = vmatpush1.msra.mxu0 0.0
    %1395 = vmatprep.subr.mxu0 0.0
    %1396 = vmatpush1.msra.mxu0 0.0
    %1397 = vmatprep.subr.mxu0 0.0
    %1398 = vmatpush1.msra.mxu0 0.0
    %1399 = vmatprep.subr.mxu0 0.0
    %1400 = vmatpush1.msra.mxu0 0.0
    %1401 = vmatprep.subr.mxu0 0.0
    %1402 = vmatpush1.msra.mxu0 0.0
    %1403 = vmatprep.subr.mxu0 0.0
    %1404 = vmatpush1.msra.mxu0 0.0
    %1405 = vmatprep.subr.mxu0 0.0
    %1406 = vmatpush1.msra.mxu0 0.0
    %1407 = vmatprep.subr.mxu0 0.0
    %1408 = vmatpush1.msra.mxu0 0.0
    %1409 = vmatprep.subr.mxu0 0.0
    %1410 = vmatpush1.msra.mxu0 0.0
    %1411 = vmatprep.subr.mxu0 0.0
    %1412 = vmatpush1.msra.mxu0 0.0
    %1413 = vmatprep.subr.mxu0 0.0
    %1414 = vmatpush1.msra.mxu0 %v1378
    %1415 = vmatprep.subr.mxu0 0.0
    %1416 = vmatpush2.msra.mxu0 0.0
    %1417 = vmatprep.subr.mxu0 0.0
    %1418 = vmatpush2.msra.mxu0 0.0
    %1419 = vmatprep.subr.mxu0 0.0
    %1420 = vmatpush2.msra.mxu0 0.0
    %1421 = vmatprep.subr.mxu0 0.0
    %1422 = vmatpush2.msra.mxu0 0.0
    %1423 = vmatprep.subr.mxu0 0.0
    %1424 = vmatpush2.msra.mxu0 0.0
    %1425 = vmatprep.subr.mxu0 0.0
    %1426 = vmatpush2.msra.mxu0 0.0
    %1427 = vmatprep.subr.mxu0 0.0
    %1428 = vmatpush2.msra.mxu0 0.0
    %1429 = vmatprep.subr.mxu0 0.0
    %1430 = vmatpush2.msra.mxu0 0.0
    %1431 = vmatprep.subr.mxu0 0.0
    %1432 = vmatpush2.msra.mxu0 0.0
    %1433 = vmatprep.subr.mxu0 0.0
    %1434 = vmatpush2.msra.mxu0 0.0
    %1435 = vmatprep.subr.mxu0 0.0
    %1436 = vmatpush2.msra.mxu0 0.0
    %1437 = vmatprep.subr.mxu0 0.0
    %1438 = vmatpush2.msra.mxu0 0.0
    %1439 = vmatprep.subr.mxu0 0.0
    %1440 = vmatpush2.msra.mxu0 0.0
    %1441 = vmatprep.subr.mxu0 0.0
    %1442 = vmatpush2.msra.mxu0 0.0
    %1443 = vmatprep.subr.mxu0 0.0
    %1444 = vmatpush2.msra.mxu0 0.0
    %1445 = vmatprep.subr.mxu0 0.0
    %1446 = vmatpush2.msra.mxu0 0.0
    %1447 = vmatprep.mubr.f32.mxu0 0.0
    %1448 = vmatmul.mubr.f32.gmra.mxu0 %v1381
    %v1449 = vpop.f32.mrf.mxu0
    %v1450 = vadd.f32 0.0, %v1449
    %v1451 = vpop.f32.mrf.mxu0
    %1452 = vdwg.mxu0
    %1453 = vrot.lane.b32.xlu0 %v189, 112
    %v1454 = vpop.permute.xlu0 %1453
    %v1457 = vsel %vm635, %v1356, 0
    %1459 = vmatprep.subr.mxu0 0.0
    %1460 = vmatpush1.msra.mxu0 0.0
    %1461 = vmatprep.subr.mxu0 0.0
    %1462 = vmatpush1.msra.mxu0 0.0
    %1463 = vmatprep.subr.mxu0 0.0
    %1464 = vmatpush1.msra.mxu0 0.0
    %1465 = vmatprep.subr.mxu0 0.0
    %1466 = vmatpush1.msra.mxu0 0.0
    %1467 = vmatprep.subr.mxu0 0.0
    %1468 = vmatpush1.msra.mxu0 0.0
    %1469 = vmatprep.subr.mxu0 0.0
    %1470 = vmatpush1.msra.mxu0 0.0
    %1471 = vmatprep.subr.mxu0 0.0
    %1472 = vmatpush1.msra.mxu0 0.0
    %1473 = vmatprep.subr.mxu0 0.0
    %1474 = vmatpush1.msra.mxu0 0.0
    %1475 = vmatprep.subr.mxu0 0.0
    %1476 = vmatpush1.msra.mxu0 0.0
    %1477 = vmatprep.subr.mxu0 0.0
    %1478 = vmatpush1.msra.mxu0 0.0
    %1479 = vmatprep.subr.mxu0 0.0
    %1480 = vmatpush1.msra.mxu0 0.0
    %1481 = vmatprep.subr.mxu0 0.0
    %1482 = vmatpush1.msra.mxu0 0.0
    %1483 = vmatprep.subr.mxu0 0.0
    %1484 = vmatpush1.msra.mxu0 0.0
    %1485 = vmatprep.subr.mxu0 0.0
    %1486 = vmatpush1.msra.mxu0 0.0
    %1487 = vmatprep.subr.mxu0 0.0
    %1488 = vmatpush1.msra.mxu0 0.0
    %1489 = vmatprep.subr.mxu0 0.0
    %1490 = vmatpush1.msra.mxu0 %v1454
    %1491 = vmatprep.subr.mxu0 0.0
    %1492 = vmatpush2.msra.mxu0 0.0
    %1493 = vmatprep.subr.mxu0 0.0
    %1494 = vmatpush2.msra.mxu0 0.0
    %1495 = vmatprep.subr.mxu0 0.0
    %1496 = vmatpush2.msra.mxu0 0.0
    %1497 = vmatprep.subr.mxu0 0.0
    %1498 = vmatpush2.msra.mxu0 0.0
    %1499 = vmatprep.subr.mxu0 0.0
    %1500 = vmatpush2.msra.mxu0 0.0
    %1501 = vmatprep.subr.mxu0 0.0
    %1502 = vmatpush2.msra.mxu0 0.0
    %1503 = vmatprep.subr.mxu0 0.0
    %1504 = vmatpush2.msra.mxu0 0.0
    %1505 = vmatprep.subr.mxu0 0.0
    %1506 = vmatpush2.msra.mxu0 0.0
    %1507 = vmatprep.subr.mxu0 0.0
    %1508 = vmatpush2.msra.mxu0 0.0
    %1509 = vmatprep.subr.mxu0 0.0
    %1510 = vmatpush2.msra.mxu0 0.0
    %1511 = vmatprep.subr.mxu0 0.0
    %1512 = vmatpush2.msra.mxu0 0.0
    %1513 = vmatprep.subr.mxu0 0.0
    %1514 = vmatpush2.msra.mxu0 0.0
    %1515 = vmatprep.subr.mxu0 0.0
    %1516 = vmatpush2.msra.mxu0 0.0
    %1517 = vmatprep.subr.mxu0 0.0
    %1518 = vmatpush2.msra.mxu0 0.0
    %1519 = vmatprep.subr.mxu0 0.0
    %1520 = vmatpush2.msra.mxu0 0.0
    %1521 = vmatprep.subr.mxu0 0.0
    %1522 = vmatpush2.msra.mxu0 0.0
    %1523 = vmatprep.mubr.f32.mxu0 0.0
    %1524 = vmatmul.mubr.f32.gmra.mxu0 %v1457
    %v1525 = vpop.f32.mrf.mxu0
    %v1526 = vadd.f32 0.0, %v1525
    %v1527 = vpop.f32.mrf.mxu0
    %1528 = vdwg.mxu0
    %1529 = vrot.lane.b32.xlu0 %v259, 112
    %v1530 = vpop.permute.xlu0 %1529
    %v1533 = vsel %vm635, %v1358, 0
    %1535 = vmatprep.subr.mxu0 0.0
    %1536 = vmatpush1.msra.mxu0 0.0
    %1537 = vmatprep.subr.mxu0 0.0
    %1538 = vmatpush1.msra.mxu0 0.0
    %1539 = vmatprep.subr.mxu0 0.0
    %1540 = vmatpush1.msra.mxu0 0.0
    %1541 = vmatprep.subr.mxu0 0.0
    %1542 = vmatpush1.msra.mxu0 0.0
    %1543 = vmatprep.subr.mxu0 0.0
    %1544 = vmatpush1.msra.mxu0 0.0
    %1545 = vmatprep.subr.mxu0 0.0
    %1546 = vmatpush1.msra.mxu0 0.0
    %1547 = vmatprep.subr.mxu0 0.0
    %1548 = vmatpush1.msra.mxu0 0.0
    %1549 = vmatprep.subr.mxu0 0.0
    %1550 = vmatpush1.msra.mxu0 0.0
    %1551 = vmatprep.subr.mxu0 0.0
    %1552 = vmatpush1.msra.mxu0 0.0
    %1553 = vmatprep.subr.mxu0 0.0
    %1554 = vmatpush1.msra.mxu0 0.0
    %1555 = vmatprep.subr.mxu0 0.0
    %1556 = vmatpush1.msra.mxu0 0.0
    %1557 = vmatprep.subr.mxu0 0.0
    %1558 = vmatpush1.msra.mxu0 0.0
    %1559 = vmatprep.subr.mxu0 0.0
    %1560 = vmatpush1.msra.mxu0 0.0
    %1561 = vmatprep.subr.mxu0 0.0
    %1562 = vmatpush1.msra.mxu0 0.0
    %1563 = vmatprep.subr.mxu0 0.0
    %1564 = vmatpush1.msra.mxu0 0.0
    %1565 = vmatprep.subr.mxu0 0.0
    %1566 = vmatpush1.msra.mxu0 %v1530
    %1567 = vmatprep.subr.mxu0 0.0
    %1568 = vmatpush2.msra.mxu0 0.0
    %1569 = vmatprep.subr.mxu0 0.0
    %1570 = vmatpush2.msra.mxu0 0.0
    %1571 = vmatprep.subr.mxu0 0.0
    %1572 = vmatpush2.msra.mxu0 0.0
    %1573 = vmatprep.subr.mxu0 0.0
    %1574 = vmatpush2.msra.mxu0 0.0
    %1575 = vmatprep.subr.mxu0 0.0
    %1576 = vmatpush2.msra.mxu0 0.0
    %1577 = vmatprep.subr.mxu0 0.0
    %1578 = vmatpush2.msra.mxu0 0.0
    %1579 = vmatprep.subr.mxu0 0.0
    %1580 = vmatpush2.msra.mxu0 0.0
    %1581 = vmatprep.subr.mxu0 0.0
    %1582 = vmatpush2.msra.mxu0 0.0
    %1583 = vmatprep.subr.mxu0 0.0
    %1584 = vmatpush2.msra.mxu0 0.0
    %1585 = vmatprep.subr.mxu0 0.0
    %1586 = vmatpush2.msra.mxu0 0.0
    %1587 = vmatprep.subr.mxu0 0.0
    %1588 = vmatpush2.msra.mxu0 0.0
    %1589 = vmatprep.subr.mxu0 0.0
    %1590 = vmatpush2.msra.mxu0 0.0
    %1591 = vmatprep.subr.mxu0 0.0
    %1592 = vmatpush2.msra.mxu0 0.0
    %1593 = vmatprep.subr.mxu0 0.0
    %1594 = vmatpush2.msra.mxu0 0.0
    %1595 = vmatprep.subr.mxu0 0.0
    %1596 = vmatpush2.msra.mxu0 0.0
    %1597 = vmatprep.subr.mxu0 0.0
    %1598 = vmatpush2.msra.mxu0 0.0
    %1599 = vmatprep.mubr.f32.mxu0 0.0
    %1600 = vmatmul.mubr.f32.gmra.mxu0 %v1533
    %v1601 = vpop.f32.mrf.mxu0
    %v1602 = vadd.f32 0.0, %v1601
    %v1603 = vpop.f32.mrf.mxu0
    %1604 = vdwg.mxu0
    %1605 = vrot.lane.b32.xlu0 %v329, 112
    %v1606 = vpop.permute.xlu0 %1605
    %v1609 = vsel %vm635, %v1360, 0
    %1611 = vmatprep.subr.mxu0 0.0
    %1612 = vmatpush1.msra.mxu0 0.0
    %1613 = vmatprep.subr.mxu0 0.0
    %1614 = vmatpush1.msra.mxu0 0.0
    %1615 = vmatprep.subr.mxu0 0.0
    %1616 = vmatpush1.msra.mxu0 0.0
    %1617 = vmatprep.subr.mxu0 0.0
    %1618 = vmatpush1.msra.mxu0 0.0
    %1619 = vmatprep.subr.mxu0 0.0
    %1620 = vmatpush1.msra.mxu0 0.0
    %1621 = vmatprep.subr.mxu0 0.0
    %1622 = vmatpush1.msra.mxu0 0.0
    %1623 = vmatprep.subr.mxu0 0.0
    %1624 = vmatpush1.msra.mxu0 0.0
    %1625 = vmatprep.subr.mxu0 0.0
    %1626 = vmatpush1.msra.mxu0 0.0
    %1627 = vmatprep.subr.mxu0 0.0
    %1628 = vmatpush1.msra.mxu0 0.0
    %1629 = vmatprep.subr.mxu0 0.0
    %1630 = vmatpush1.msra.mxu0 0.0
    %1631 = vmatprep.subr.mxu0 0.0
    %1632 = vmatpush1.msra.mxu0 0.0
    %1633 = vmatprep.subr.mxu0 0.0
    %1634 = vmatpush1.msra.mxu0 0.0
    %1635 = vmatprep.subr.mxu0 0.0
    %1636 = vmatpush1.msra.mxu0 0.0
    %1637 = vmatprep.subr.mxu0 0.0
    %1638 = vmatpush1.msra.mxu0 0.0
    %1639 = vmatprep.subr.mxu0 0.0
    %1640 = vmatpush1.msra.mxu0 0.0
    %1641 = vmatprep.subr.mxu0 0.0
    %1642 = vmatpush1.msra.mxu0 %v1606
    %1643 = vmatprep.subr.mxu0 0.0
    %1644 = vmatpush2.msra.mxu0 0.0
    %1645 = vmatprep.subr.mxu0 0.0
    %1646 = vmatpush2.msra.mxu0 0.0
    %1647 = vmatprep.subr.mxu0 0.0
    %1648 = vmatpush2.msra.mxu0 0.0
    %1649 = vmatprep.subr.mxu0 0.0
    %1650 = vmatpush2.msra.mxu0 0.0
    %1651 = vmatprep.subr.mxu0 0.0
    %1652 = vmatpush2.msra.mxu0 0.0
    %1653 = vmatprep.subr.mxu0 0.0
    %1654 = vmatpush2.msra.mxu0 0.0
    %1655 = vmatprep.subr.mxu0 0.0
    %1656 = vmatpush2.msra.mxu0 0.0
    %1657 = vmatprep.subr.mxu0 0.0
    %1658 = vmatpush2.msra.mxu0 0.0
    %1659 = vmatprep.subr.mxu0 0.0
    %1660 = vmatpush2.msra.mxu0 0.0
    %1661 = vmatprep.subr.mxu0 0.0
    %1662 = vmatpush2.msra.mxu0 0.0
    %1663 = vmatprep.subr.mxu0 0.0
    %1664 = vmatpush2.msra.mxu0 0.0
    %1665 = vmatprep.subr.mxu0 0.0
    %1666 = vmatpush2.msra.mxu0 0.0
    %1667 = vmatprep.subr.mxu0 0.0
    %1668 = vmatpush2.msra.mxu0 0.0
    %1669 = vmatprep.subr.mxu0 0.0
    %1670 = vmatpush2.msra.mxu0 0.0
    %1671 = vmatprep.subr.mxu0 0.0
    %1672 = vmatpush2.msra.mxu0 0.0
    %1673 = vmatprep.subr.mxu0 0.0
    %1674 = vmatpush2.msra.mxu0 0.0
    %1675 = vmatprep.mubr.f32.mxu0 0.0
    %1676 = vmatmul.mubr.f32.gmra.mxu0 %v1609
    %v1677 = vpop.f32.mrf.mxu0
    %v1678 = vadd.f32 0.0, %v1677
    %v1679 = vpop.f32.mrf.mxu0
    %1680 = vdwg.mxu0
    %1681 = vrot.lane.b32.xlu0 %v402, 112
    %v1682 = vpop.permute.xlu0 %1681
    %v1685 = vsel %vm635, %v1362, 0
    %1687 = vmatprep.subr.mxu0 0.0
    %1688 = vmatpush1.msra.mxu0 0.0
    %1689 = vmatprep.subr.mxu0 0.0
    %1690 = vmatpush1.msra.mxu0 0.0
    %1691 = vmatprep.subr.mxu0 0.0
    %1692 = vmatpush1.msra.mxu0 0.0
    %1693 = vmatprep.subr.mxu0 0.0
    %1694 = vmatpush1.msra.mxu0 0.0
    %1695 = vmatprep.subr.mxu0 0.0
    %1696 = vmatpush1.msra.mxu0 0.0
    %1697 = vmatprep.subr.mxu0 0.0
    %1698 = vmatpush1.msra.mxu0 0.0
    %1699 = vmatprep.subr.mxu0 0.0
    %1700 = vmatpush1.msra.mxu0 0.0
    %1701 = vmatprep.subr.mxu0 0.0
    %1702 = vmatpush1.msra.mxu0 0.0
    %1703 = vmatprep.subr.mxu0 0.0
    %1704 = vmatpush1.msra.mxu0 0.0
    %1705 = vmatprep.subr.mxu0 0.0
    %1706 = vmatpush1.msra.mxu0 0.0
    %1707 = vmatprep.subr.mxu0 0.0
    %1708 = vmatpush1.msra.mxu0 0.0
    %1709 = vmatprep.subr.mxu0 0.0
    %1710 = vmatpush1.msra.mxu0 0.0
    %1711 = vmatprep.subr.mxu0 0.0
    %1712 = vmatpush1.msra.mxu0 0.0
    %1713 = vmatprep.subr.mxu0 0.0
    %1714 = vmatpush1.msra.mxu0 0.0
    %1715 = vmatprep.subr.mxu0 0.0
    %1716 = vmatpush1.msra.mxu0 0.0
    %1717 = vmatprep.subr.mxu0 0.0
    %1718 = vmatpush1.msra.mxu0 %v1682
    %1719 = vmatprep.subr.mxu0 0.0
    %1720 = vmatpush2.msra.mxu0 0.0
    %1721 = vmatprep.subr.mxu0 0.0
    %1722 = vmatpush2.msra.mxu0 0.0
    %1723 = vmatprep.subr.mxu0 0.0
    %1724 = vmatpush2.msra.mxu0 0.0
    %1725 = vmatprep.subr.mxu0 0.0
    %1726 = vmatpush2.msra.mxu0 0.0
    %1727 = vmatprep.subr.mxu0 0.0
    %1728 = vmatpush2.msra.mxu0 0.0
    %1729 = vmatprep.subr.mxu0 0.0
    %1730 = vmatpush2.msra.mxu0 0.0
    %1731 = vmatprep.subr.mxu0 0.0
    %1732 = vmatpush2.msra.mxu0 0.0
    %1733 = vmatprep.subr.mxu0 0.0
    %1734 = vmatpush2.msra.mxu0 0.0
    %1735 = vmatprep.subr.mxu0 0.0
    %1736 = vmatpush2.msra.mxu0 0.0
    %1737 = vmatprep.subr.mxu0 0.0
    %1738 = vmatpush2.msra.mxu0 0.0
    %1739 = vmatprep.subr.mxu0 0.0
    %1740 = vmatpush2.msra.mxu0 0.0
    %1741 = vmatprep.subr.mxu0 0.0
    %1742 = vmatpush2.msra.mxu0 0.0
    %1743 = vmatprep.subr.mxu0 0.0
    %1744 = vmatpush2.msra.mxu0 0.0
    %1745 = vmatprep.subr.mxu0 0.0
    %1746 = vmatpush2.msra.mxu0 0.0
    %1747 = vmatprep.subr.mxu0 0.0
    %1748 = vmatpush2.msra.mxu0 0.0
    %1749 = vmatprep.subr.mxu0 0.0
    %1750 = vmatpush2.msra.mxu0 0.0
    %1751 = vmatprep.mubr.f32.mxu0 0.0
    %1752 = vmatmul.mubr.f32.gmra.mxu0 %v1685
    %v1753 = vpop.f32.mrf.mxu0
    %v1754 = vadd.f32 0.0, %v1753
    %v1755 = vpop.f32.mrf.mxu0
    %1756 = vdwg.mxu0
    %1757 = vrot.lane.b32.xlu0 %v472, 112
    %v1758 = vpop.permute.xlu0 %1757
    %v1761 = vsel %vm635, %v1364, 0
    %1763 = vmatprep.subr.mxu0 0.0
    %1764 = vmatpush1.msra.mxu0 0.0
    %1765 = vmatprep.subr.mxu0 0.0
    %1766 = vmatpush1.msra.mxu0 0.0
    %1767 = vmatprep.subr.mxu0 0.0
    %1768 = vmatpush1.msra.mxu0 0.0
    %1769 = vmatprep.subr.mxu0 0.0
    %1770 = vmatpush1.msra.mxu0 0.0
    %1771 = vmatprep.subr.mxu0 0.0
    %1772 = vmatpush1.msra.mxu0 0.0
    %1773 = vmatprep.subr.mxu0 0.0
    %1774 = vmatpush1.msra.mxu0 0.0
    %1775 = vmatprep.subr.mxu0 0.0
    %1776 = vmatpush1.msra.mxu0 0.0
    %1777 = vmatprep.subr.mxu0 0.0
    %1778 = vmatpush1.msra.mxu0 0.0
    %1779 = vmatprep.subr.mxu0 0.0
    %1780 = vmatpush1.msra.mxu0 0.0
    %1781 = vmatprep.subr.mxu0 0.0
    %1782 = vmatpush1.msra.mxu0 0.0
    %1783 = vmatprep.subr.mxu0 0.0
    %1784 = vmatpush1.msra.mxu0 0.0
    %1785 = vmatprep.subr.mxu0 0.0
    %1786 = vmatpush1.msra.mxu0 0.0
    %1787 = vmatprep.subr.mxu0 0.0
    %1788 = vmatpush1.msra.mxu0 0.0
    %1789 = vmatprep.subr.mxu0 0.0
    %1790 = vmatpush1.msra.mxu0 0.0
    %1791 = vmatprep.subr.mxu0 0.0
    %1792 = vmatpush1.msra.mxu0 0.0
    %1793 = vmatprep.subr.mxu0 0.0
    %1794 = vmatpush1.msra.mxu0 %v1758
    %1795 = vmatprep.subr.mxu0 0.0
    %1796 = vmatpush2.msra.mxu0 0.0
    %1797 = vmatprep.subr.mxu0 0.0
    %1798 = vmatpush2.msra.mxu0 0.0
    %1799 = vmatprep.subr.mxu0 0.0
    %1800 = vmatpush2.msra.mxu0 0.0
    %1801 = vmatprep.subr.mxu0 0.0
    %1802 = vmatpush2.msra.mxu0 0.0
    %1803 = vmatprep.subr.mxu0 0.0
    %1804 = vmatpush2.msra.mxu0 0.0
    %1805 = vmatprep.subr.mxu0 0.0
    %1806 = vmatpush2.msra.mxu0 0.0
    %1807 = vmatprep.subr.mxu0 0.0
    %1808 = vmatpush2.msra.mxu0 0.0
    %1809 = vmatprep.subr.mxu0 0.0
    %1810 = vmatpush2.msra.mxu0 0.0
    %1811 = vmatprep.subr.mxu0 0.0
    %1812 = vmatpush2.msra.mxu0 0.0
    %1813 = vmatprep.subr.mxu0 0.0
    %1814 = vmatpush2.msra.mxu0 0.0
    %1815 = vmatprep.subr.mxu0 0.0
    %1816 = vmatpush2.msra.mxu0 0.0
    %1817 = vmatprep.subr.mxu0 0.0
    %1818 = vmatpush2.msra.mxu0 0.0
    %1819 = vmatprep.subr.mxu0 0.0
    %1820 = vmatpush2.msra.mxu0 0.0
    %1821 = vmatprep.subr.mxu0 0.0
    %1822 = vmatpush2.msra.mxu0 0.0
    %1823 = vmatprep.subr.mxu0 0.0
    %1824 = vmatpush2.msra.mxu0 0.0
    %1825 = vmatprep.subr.mxu0 0.0
    %1826 = vmatpush2.msra.mxu0 0.0
    %1827 = vmatprep.mubr.f32.mxu0 0.0
    %1828 = vmatmul.mubr.f32.gmra.mxu0 %v1761
    %v1829 = vpop.f32.mrf.mxu0
    %v1830 = vadd.f32 0.0, %v1829
    %v1831 = vpop.f32.mrf.mxu0
    %1832 = vdwg.mxu0
    %1833 = vrot.lane.b32.xlu0 %v542, 112
    %v1834 = vpop.permute.xlu0 %1833
    %v1837 = vsel %vm635, %v1366, 0
    %1839 = vmatprep.subr.mxu0 0.0
    %1840 = vmatpush1.msra.mxu0 0.0
    %1841 = vmatprep.subr.mxu0 0.0
    %1842 = vmatpush1.msra.mxu0 0.0
    %1843 = vmatprep.subr.mxu0 0.0
    %1844 = vmatpush1.msra.mxu0 0.0
    %1845 = vmatprep.subr.mxu0 0.0
    %1846 = vmatpush1.msra.mxu0 0.0
    %1847 = vmatprep.subr.mxu0 0.0
    %1848 = vmatpush1.msra.mxu0 0.0
    %1849 = vmatprep.subr.mxu0 0.0
    %1850 = vmatpush1.msra.mxu0 0.0
    %1851 = vmatprep.subr.mxu0 0.0
    %1852 = vmatpush1.msra.mxu0 0.0
    %1853 = vmatprep.subr.mxu0 0.0
    %1854 = vmatpush1.msra.mxu0 0.0
    %1855 = vmatprep.subr.mxu0 0.0
    %1856 = vmatpush1.msra.mxu0 0.0
    %1857 = vmatprep.subr.mxu0 0.0
    %1858 = vmatpush1.msra.mxu0 0.0
    %1859 = vmatprep.subr.mxu0 0.0
    %1860 = vmatpush1.msra.mxu0 0.0
    %1861 = vmatprep.subr.mxu0 0.0
    %1862 = vmatpush1.msra.mxu0 0.0
    %1863 = vmatprep.subr.mxu0 0.0
    %1864 = vmatpush1.msra.mxu0 0.0
    %1865 = vmatprep.subr.mxu0 0.0
    %1866 = vmatpush1.msra.mxu0 0.0
    %1867 = vmatprep.subr.mxu0 0.0
    %1868 = vmatpush1.msra.mxu0 0.0
    %1869 = vmatprep.subr.mxu0 0.0
    %1870 = vmatpush1.msra.mxu0 %v1834
    %1871 = vmatprep.subr.mxu0 0.0
    %1872 = vmatpush2.msra.mxu0 0.0
    %1873 = vmatprep.subr.mxu0 0.0
    %1874 = vmatpush2.msra.mxu0 0.0
    %1875 = vmatprep.subr.mxu0 0.0
    %1876 = vmatpush2.msra.mxu0 0.0
    %1877 = vmatprep.subr.mxu0 0.0
    %1878 = vmatpush2.msra.mxu0 0.0
    %1879 = vmatprep.subr.mxu0 0.0
    %1880 = vmatpush2.msra.mxu0 0.0
    %1881 = vmatprep.subr.mxu0 0.0
    %1882 = vmatpush2.msra.mxu0 0.0
    %1883 = vmatprep.subr.mxu0 0.0
    %1884 = vmatpush2.msra.mxu0 0.0
    %1885 = vmatprep.subr.mxu0 0.0
    %1886 = vmatpush2.msra.mxu0 0.0
    %1887 = vmatprep.subr.mxu0 0.0
    %1888 = vmatpush2.msra.mxu0 0.0
    %1889 = vmatprep.subr.mxu0 0.0
    %1890 = vmatpush2.msra.mxu0 0.0
    %1891 = vmatprep.subr.mxu0 0.0
    %1892 = vmatpush2.msra.mxu0 0.0
    %1893 = vmatprep.subr.mxu0 0.0
    %1894 = vmatpush2.msra.mxu0 0.0
    %1895 = vmatprep.subr.mxu0 0.0
    %1896 = vmatpush2.msra.mxu0 0.0
    %1897 = vmatprep.subr.mxu0 0.0
    %1898 = vmatpush2.msra.mxu0 0.0
    %1899 = vmatprep.subr.mxu0 0.0
    %1900 = vmatpush2.msra.mxu0 0.0
    %1901 = vmatprep.subr.mxu0 0.0
    %1902 = vmatpush2.msra.mxu0 0.0
    %1903 = vmatprep.mubr.f32.mxu0 0.0
    %1904 = vmatmul.mubr.f32.gmra.mxu0 %v1837
    %v1905 = vpop.f32.mrf.mxu0
    %v1906 = vadd.f32 0.0, %v1905
    %v1907 = vpop.f32.mrf.mxu0
    %1908 = vdwg.mxu0
    %1909 = vrot.lane.b32.xlu0 %v612, 112
    %v1910 = vpop.permute.xlu0 %1909
    %v1913 = vsel %vm635, %v1368, 0
    %1915 = vmatprep.subr.mxu0 0.0
    %1916 = vmatpush1.msra.mxu0 0.0
    %1917 = vmatprep.subr.mxu0 0.0
    %1918 = vmatpush1.msra.mxu0 0.0
    %1919 = vmatprep.subr.mxu0 0.0
    %1920 = vmatpush1.msra.mxu0 0.0
    %1921 = vmatprep.subr.mxu0 0.0
    %1922 = vmatpush1.msra.mxu0 0.0
    %1923 = vmatprep.subr.mxu0 0.0
    %1924 = vmatpush1.msra.mxu0 0.0
    %1925 = vmatprep.subr.mxu0 0.0
    %1926 = vmatpush1.msra.mxu0 0.0
    %1927 = vmatprep.subr.mxu0 0.0
    %1928 = vmatpush1.msra.mxu0 0.0
    %1929 = vmatprep.subr.mxu0 0.0
    %1930 = vmatpush1.msra.mxu0 0.0
    %1931 = vmatprep.subr.mxu0 0.0
    %1932 = vmatpush1.msra.mxu0 0.0
    %1933 = vmatprep.subr.mxu0 0.0
    %1934 = vmatpush1.msra.mxu0 0.0
    %1935 = vmatprep.subr.mxu0 0.0
    %1936 = vmatpush1.msra.mxu0 0.0
    %1937 = vmatprep.subr.mxu0 0.0
    %1938 = vmatpush1.msra.mxu0 0.0
    %1939 = vmatprep.subr.mxu0 0.0
    %1940 = vmatpush1.msra.mxu0 0.0
    %1941 = vmatprep.subr.mxu0 0.0
    %1942 = vmatpush1.msra.mxu0 0.0
    %1943 = vmatprep.subr.mxu0 0.0
    %1944 = vmatpush1.msra.mxu0 0.0
    %1945 = vmatprep.subr.mxu0 0.0
    %1946 = vmatpush1.msra.mxu0 %v1910
    %1947 = vmatprep.subr.mxu0 0.0
    %1948 = vmatpush2.msra.mxu0 0.0
    %1949 = vmatprep.subr.mxu0 0.0
    %1950 = vmatpush2.msra.mxu0 0.0
    %1951 = vmatprep.subr.mxu0 0.0
    %1952 = vmatpush2.msra.mxu0 0.0
    %1953 = vmatprep.subr.mxu0 0.0
    %1954 = vmatpush2.msra.mxu0 0.0
    %1955 = vmatprep.subr.mxu0 0.0
    %1956 = vmatpush2.msra.mxu0 0.0
    %1957 = vmatprep.subr.mxu0 0.0
    %1958 = vmatpush2.msra.mxu0 0.0
    %1959 = vmatprep.subr.mxu0 0.0
    %1960 = vmatpush2.msra.mxu0 0.0
    %1961 = vmatprep.subr.mxu0 0.0
    %1962 = vmatpush2.msra.mxu0 0.0
    %1963 = vmatprep.subr.mxu0 0.0
    %1964 = vmatpush2.msra.mxu0 0.0
    %1965 = vmatprep.subr.mxu0 0.0
    %1966 = vmatpush2.msra.mxu0 0.0
    %1967 = vmatprep.subr.mxu0 0.0
    %1968 = vmatpush2.msra.mxu0 0.0
    %1969 = vmatprep.subr.mxu0 0.0
    %1970 = vmatpush2.msra.mxu0 0.0
    %1971 = vmatprep.subr.mxu0 0.0
    %1972 = vmatpush2.msra.mxu0 0.0
    %1973 = vmatprep.subr.mxu0 0.0
    %1974 = vmatpush2.msra.mxu0 0.0
    %1975 = vmatprep.subr.mxu0 0.0
    %1976 = vmatpush2.msra.mxu0 0.0
    %1977 = vmatprep.subr.mxu0 0.0
    %1978 = vmatpush2.msra.mxu0 0.0
    %1979 = vmatprep.mubr.f32.mxu0 0.0
    %1980 = vmatmul.mubr.f32.gmra.mxu0 %v1913
    %v1981 = vpop.f32.mrf.mxu0
    %v1982 = vadd.f32 0.0, %v1981
    %v1983 = vpop.f32.mrf.mxu0
    %1984 = vdwg.mxu0
    %v1985 = vld [vmem:[%s3] sm:$0xff]
    %v1986 = vld [vmem:[%s3 + $0x8] sm:$0xff]
    %v1987 = vld [vmem:[%s3 + $0x10] sm:$0xff]
    %v1988 = vld [vmem:[%s3 + $0x18] sm:$0xff]
    %v1990 = vsel %vm635, %v1450, 0
    %1992 = vmatprep.subr.mxu0 0.0
    %1993 = vmatpush1.msra.mxu0 0.0
    %1994 = vmatprep.subr.mxu0 0.0
    %1995 = vmatpush1.msra.mxu0 0.0
    %1996 = vmatprep.subr.mxu0 0.0
    %1997 = vmatpush1.msra.mxu0 0.0
    %1998 = vmatprep.subr.mxu0 0.0
    %1999 = vmatpush1.msra.mxu0 0.0
    %2000 = vmatprep.subr.mxu0 0.0
    %2001 = vmatpush1.msra.mxu0 0.0
    %2002 = vmatprep.subr.mxu0 0.0
    %2003 = vmatpush1.msra.mxu0 0.0
    %2004 = vmatprep.subr.mxu0 0.0
    %2005 = vmatpush1.msra.mxu0 0.0
    %2006 = vmatprep.subr.mxu0 0.0
    %2007 = vmatpush1.msra.mxu0 0.0
    %2008 = vmatprep.subr.mxu0 0.0
    %2009 = vmatpush1.msra.mxu0 0.0
    %2010 = vmatprep.subr.mxu0 0.0
    %2011 = vmatpush1.msra.mxu0 0.0
    %2012 = vmatprep.subr.mxu0 0.0
    %2013 = vmatpush1.msra.mxu0 0.0
    %2014 = vmatprep.subr.mxu0 0.0
    %2015 = vmatpush1.msra.mxu0 0.0
    %2016 = vmatprep.subr.mxu0 0.0
    %2017 = vmatpush1.msra.mxu0 0.0
    %2018 = vmatprep.subr.mxu0 0.0
    %2019 = vmatpush1.msra.mxu0 0.0
    %2020 = vmatprep.subr.mxu0 0.0
    %2021 = vmatpush1.msra.mxu0 0.0
    %2022 = vmatprep.subr.mxu0 0.0
    %2023 = vmatpush1.msra.mxu0 %v1985
    %2024 = vmatprep.subr.mxu0 0.0
    %2025 = vmatpush2.msra.mxu0 0.0
    %2026 = vmatprep.subr.mxu0 0.0
    %2027 = vmatpush2.msra.mxu0 0.0
    %2028 = vmatprep.subr.mxu0 0.0
    %2029 = vmatpush2.msra.mxu0 0.0
    %2030 = vmatprep.subr.mxu0 0.0
    %2031 = vmatpush2.msra.mxu0 0.0
    %2032 = vmatprep.subr.mxu0 0.0
    %2033 = vmatpush2.msra.mxu0 0.0
    %2034 = vmatprep.subr.mxu0 0.0
    %2035 = vmatpush2.msra.mxu0 0.0
    %2036 = vmatprep.subr.mxu0 0.0
    %2037 = vmatpush2.msra.mxu0 0.0
    %2038 = vmatprep.subr.mxu0 0.0
    %2039 = vmatpush2.msra.mxu0 0.0
    %2040 = vmatprep.subr.mxu0 0.0
    %2041 = vmatpush2.msra.mxu0 0.0
    %2042 = vmatprep.subr.mxu0 0.0
    %2043 = vmatpush2.msra.mxu0 0.0
    %2044 = vmatprep.subr.mxu0 0.0
    %2045 = vmatpush2.msra.mxu0 0.0
    %2046 = vmatprep.subr.mxu0 0.0
    %2047 = vmatpush2.msra.mxu0 0.0
    %2048 = vmatprep.subr.mxu0 0.0
    %2049 = vmatpush2.msra.mxu0 0.0
    %2050 = vmatprep.subr.mxu0 0.0
    %2051 = vmatpush2.msra.mxu0 0.0
    %2052 = vmatprep.subr.mxu0 0.0
    %2053 = vmatpush2.msra.mxu0 0.0
    %2054 = vmatprep.subr.mxu0 0.0
    %2055 = vmatpush2.msra.mxu0 0.0
    %2056 = vmatprep.mubr.f32.mxu0 0.0
    %2057 = vmatmul.mubr.f32.gmra.mxu0 %v1990
    %v2058 = vpop.f32.mrf.mxu0
    %v2059 = vadd.f32 0.0, %v2058
    %v2060 = vpop.f32.mrf.mxu0
    %2061 = vdwg.mxu0
    %v2063 = vsel %vm635, %v1526, 0
    %2065 = vmatprep.subr.mxu0 0.0
    %2066 = vmatpush1.msra.mxu0 0.0
    %2067 = vmatprep.subr.mxu0 0.0
    %2068 = vmatpush1.msra.mxu0 0.0
    %2069 = vmatprep.subr.mxu0 0.0
    %2070 = vmatpush1.msra.mxu0 0.0
    %2071 = vmatprep.subr.mxu0 0.0
    %2072 = vmatpush1.msra.mxu0 0.0
    %2073 = vmatprep.subr.mxu0 0.0
    %2074 = vmatpush1.msra.mxu0 0.0
    %2075 = vmatprep.subr.mxu0 0.0
    %2076 = vmatpush1.msra.mxu0 0.0
    %2077 = vmatprep.subr.mxu0 0.0
    %2078 = vmatpush1.msra.mxu0 0.0
    %2079 = vmatprep.subr.mxu0 0.0
    %2080 = vmatpush1.msra.mxu0 0.0
    %2081 = vmatprep.subr.mxu0 0.0
    %2082 = vmatpush1.msra.mxu0 0.0
    %2083 = vmatprep.subr.mxu0 0.0
    %2084 = vmatpush1.msra.mxu0 0.0
    %2085 = vmatprep.subr.mxu0 0.0
    %2086 = vmatpush1.msra.mxu0 0.0
    %2087 = vmatprep.subr.mxu0 0.0
    %2088 = vmatpush1.msra.mxu0 0.0
    %2089 = vmatprep.subr.mxu0 0.0
    %2090 = vmatpush1.msra.mxu0 0.0
    %2091 = vmatprep.subr.mxu0 0.0
    %2092 = vmatpush1.msra.mxu0 0.0
    %2093 = vmatprep.subr.mxu0 0.0
    %2094 = vmatpush1.msra.mxu0 0.0
    %2095 = vmatprep.subr.mxu0 0.0
    %2096 = vmatpush1.msra.mxu0 %v1986
    %2097 = vmatprep.subr.mxu0 0.0
    %2098 = vmatpush2.msra.mxu0 0.0
    %2099 = vmatprep.subr.mxu0 0.0
    %2100 = vmatpush2.msra.mxu0 0.0
    %2101 = vmatprep.subr.mxu0 0.0
    %2102 = vmatpush2.msra.mxu0 0.0
    %2103 = vmatprep.subr.mxu0 0.0
    %2104 = vmatpush2.msra.mxu0 0.0
    %2105 = vmatprep.subr.mxu0 0.0
    %2106 = vmatpush2.msra.mxu0 0.0
    %2107 = vmatprep.subr.mxu0 0.0
    %2108 = vmatpush2.msra.mxu0 0.0
    %2109 = vmatprep.subr.mxu0 0.0
    %2110 = vmatpush2.msra.mxu0 0.0
    %2111 = vmatprep.subr.mxu0 0.0
    %2112 = vmatpush2.msra.mxu0 0.0
    %2113 = vmatprep.subr.mxu0 0.0
    %2114 = vmatpush2.msra.mxu0 0.0
    %2115 = vmatprep.subr.mxu0 0.0
    %2116 = vmatpush2.msra.mxu0 0.0
    %2117 = vmatprep.subr.mxu0 0.0
    %2118 = vmatpush2.msra.mxu0 0.0
    %2119 = vmatprep.subr.mxu0 0.0
    %2120 = vmatpush2.msra.mxu0 0.0
    %2121 = vmatprep.subr.mxu0 0.0
    %2122 = vmatpush2.msra.mxu0 0.0
    %2123 = vmatprep.subr.mxu0 0.0
    %2124 = vmatpush2.msra.mxu0 0.0
    %2125 = vmatprep.subr.mxu0 0.0
    %2126 = vmatpush2.msra.mxu0 0.0
    %2127 = vmatprep.subr.mxu0 0.0
    %2128 = vmatpush2.msra.mxu0 0.0
    %2129 = vmatprep.mubr.f32.mxu0 0.0
    %2130 = vmatmul.mubr.f32.gmra.mxu0 %v2063
    %v2131 = vpop.f32.mrf.mxu0
    %v2132 = vadd.f32 0.0, %v2131
    %v2133 = vpop.f32.mrf.mxu0
    %2134 = vdwg.mxu0
    %v2136 = vsel %vm635, %v1602, 0
    %2138 = vmatprep.subr.mxu0 0.0
    %2139 = vmatpush1.msra.mxu0 0.0
    %2140 = vmatprep.subr.mxu0 0.0
    %2141 = vmatpush1.msra.mxu0 0.0
    %2142 = vmatprep.subr.mxu0 0.0
    %2143 = vmatpush1.msra.mxu0 0.0
    %2144 = vmatprep.subr.mxu0 0.0
    %2145 = vmatpush1.msra.mxu0 0.0
    %2146 = vmatprep.subr.mxu0 0.0
    %2147 = vmatpush1.msra.mxu0 0.0
    %2148 = vmatprep.subr.mxu0 0.0
    %2149 = vmatpush1.msra.mxu0 0.0
    %2150 = vmatprep.subr.mxu0 0.0
    %2151 = vmatpush1.msra.mxu0 0.0
    %2152 = vmatprep.subr.mxu0 0.0
    %2153 = vmatpush1.msra.mxu0 0.0
    %2154 = vmatprep.subr.mxu0 0.0
    %2155 = vmatpush1.msra.mxu0 0.0
    %2156 = vmatprep.subr.mxu0 0.0
    %2157 = vmatpush1.msra.mxu0 0.0
    %2158 = vmatprep.subr.mxu0 0.0
    %2159 = vmatpush1.msra.mxu0 0.0
    %2160 = vmatprep.subr.mxu0 0.0
    %2161 = vmatpush1.msra.mxu0 0.0
    %2162 = vmatprep.subr.mxu0 0.0
    %2163 = vmatpush1.msra.mxu0 0.0
    %2164 = vmatprep.subr.mxu0 0.0
    %2165 = vmatpush1.msra.mxu0 0.0
    %2166 = vmatprep.subr.mxu0 0.0
    %2167 = vmatpush1.msra.mxu0 0.0
    %2168 = vmatprep.subr.mxu0 0.0
    %2169 = vmatpush1.msra.mxu0 %v1987
    %2170 = vmatprep.subr.mxu0 0.0
    %2171 = vmatpush2.msra.mxu0 0.0
    %2172 = vmatprep.subr.mxu0 0.0
    %2173 = vmatpush2.msra.mxu0 0.0
    %2174 = vmatprep.subr.mxu0 0.0
    %2175 = vmatpush2.msra.mxu0 0.0
    %2176 = vmatprep.subr.mxu0 0.0
    %2177 = vmatpush2.msra.mxu0 0.0
    %2178 = vmatprep.subr.mxu0 0.0
    %2179 = vmatpush2.msra.mxu0 0.0
    %2180 = vmatprep.subr.mxu0 0.0
    %2181 = vmatpush2.msra.mxu0 0.0
    %2182 = vmatprep.subr.mxu0 0.0
    %2183 = vmatpush2.msra.mxu0 0.0
    %2184 = vmatprep.subr.mxu0 0.0
    %2185 = vmatpush2.msra.mxu0 0.0
    %2186 = vmatprep.subr.mxu0 0.0
    %2187 = vmatpush2.msra.mxu0 0.0
    %2188 = vmatprep.subr.mxu0 0.0
    %2189 = vmatpush2.msra.mxu0 0.0
    %2190 = vmatprep.subr.mxu0 0.0
    %2191 = vmatpush2.msra.mxu0 0.0
    %2192 = vmatprep.subr.mxu0 0.0
    %2193 = vmatpush2.msra.mxu0 0.0
    %2194 = vmatprep.subr.mxu0 0.0
    %2195 = vmatpush2.msra.mxu0 0.0
    %2196 = vmatprep.subr.mxu0 0.0
    %2197 = vmatpush2.msra.mxu0 0.0
    %2198 = vmatprep.subr.mxu0 0.0
    %2199 = vmatpush2.msra.mxu0 0.0
    %2200 = vmatprep.subr.mxu0 0.0
    %2201 = vmatpush2.msra.mxu0 0.0
    %2202 = vmatprep.mubr.f32.mxu0 0.0
    %2203 = vmatmul.mubr.f32.gmra.mxu0 %v2136
    %v2204 = vpop.f32.mrf.mxu0
    %v2205 = vadd.f32 0.0, %v2204
    %v2206 = vpop.f32.mrf.mxu0
    %2207 = vdwg.mxu0
    %v2209 = vsel %vm635, %v1678, 0
    %2211 = vmatprep.subr.mxu0 0.0
    %2212 = vmatpush1.msra.mxu0 0.0
    %2213 = vmatprep.subr.mxu0 0.0
    %2214 = vmatpush1.msra.mxu0 0.0
    %2215 = vmatprep.subr.mxu0 0.0
    %2216 = vmatpush1.msra.mxu0 0.0
    %2217 = vmatprep.subr.mxu0 0.0
    %2218 = vmatpush1.msra.mxu0 0.0
    %2219 = vmatprep.subr.mxu0 0.0
    %2220 = vmatpush1.msra.mxu0 0.0
    %2221 = vmatprep.subr.mxu0 0.0
    %2222 = vmatpush1.msra.mxu0 0.0
    %2223 = vmatprep.subr.mxu0 0.0
    %2224 = vmatpush1.msra.mxu0 0.0
    %2225 = vmatprep.subr.mxu0 0.0
    %2226 = vmatpush1.msra.mxu0 0.0
    %2227 = vmatprep.subr.mxu0 0.0
    %2228 = vmatpush1.msra.mxu0 0.0
    %2229 = vmatprep.subr.mxu0 0.0
    %2230 = vmatpush1.msra.mxu0 0.0
    %2231 = vmatprep.subr.mxu0 0.0
    %2232 = vmatpush1.msra.mxu0 0.0
    %2233 = vmatprep.subr.mxu0 0.0
    %2234 = vmatpush1.msra.mxu0 0.0
    %2235 = vmatprep.subr.mxu0 0.0
    %2236 = vmatpush1.msra.mxu0 0.0
    %2237 = vmatprep.subr.mxu0 0.0
    %2238 = vmatpush1.msra.mxu0 0.0
    %2239 = vmatprep.subr.mxu0 0.0
    %2240 = vmatpush1.msra.mxu0 0.0
    %2241 = vmatprep.subr.mxu0 0.0
    %2242 = vmatpush1.msra.mxu0 %v1988
    %2243 = vmatprep.subr.mxu0 0.0
    %2244 = vmatpush2.msra.mxu0 0.0
    %2245 = vmatprep.subr.mxu0 0.0
    %2246 = vmatpush2.msra.mxu0 0.0
    %2247 = vmatprep.subr.mxu0 0.0
    %2248 = vmatpush2.msra.mxu0 0.0
    %2249 = vmatprep.subr.mxu0 0.0
    %2250 = vmatpush2.msra.mxu0 0.0
    %2251 = vmatprep.subr.mxu0 0.0
    %2252 = vmatpush2.msra.mxu0 0.0
    %2253 = vmatprep.subr.mxu0 0.0
    %2254 = vmatpush2.msra.mxu0 0.0
    %2255 = vmatprep.subr.mxu0 0.0
    %2256 = vmatpush2.msra.mxu0 0.0
    %2257 = vmatprep.subr.mxu0 0.0
    %2258 = vmatpush2.msra.mxu0 0.0
    %2259 = vmatprep.subr.mxu0 0.0
    %2260 = vmatpush2.msra.mxu0 0.0
    %2261 = vmatprep.subr.mxu0 0.0
    %2262 = vmatpush2.msra.mxu0 0.0
    %2263 = vmatprep.subr.mxu0 0.0
    %2264 = vmatpush2.msra.mxu0 0.0
    %2265 = vmatprep.subr.mxu0 0.0
    %2266 = vmatpush2.msra.mxu0 0.0
    %2267 = vmatprep.subr.mxu0 0.0
    %2268 = vmatpush2.msra.mxu0 0.0
    %2269 = vmatprep.subr.mxu0 0.0
    %2270 = vmatpush2.msra.mxu0 0.0
    %2271 = vmatprep.subr.mxu0 0.0
    %2272 = vmatpush2.msra.mxu0 0.0
    %2273 = vmatprep.subr.mxu0 0.0
    %2274 = vmatpush2.msra.mxu0 0.0
    %2275 = vmatprep.mubr.f32.mxu0 0.0
    %2276 = vmatmul.mubr.f32.gmra.mxu0 %v2209
    %v2277 = vpop.f32.mrf.mxu0
    %v2278 = vadd.f32 0.0, %v2277
    %v2279 = vpop.f32.mrf.mxu0
    %2280 = vdwg.mxu0
    %v2282 = vsel %vm635, %v1754, 0
    %2284 = vmatprep.subr.mxu0 0.0
    %2285 = vmatpush1.msra.mxu0 0.0
    %2286 = vmatprep.subr.mxu0 0.0
    %2287 = vmatpush1.msra.mxu0 0.0
    %2288 = vmatprep.subr.mxu0 0.0
    %2289 = vmatpush1.msra.mxu0 0.0
    %2290 = vmatprep.subr.mxu0 0.0
    %2291 = vmatpush1.msra.mxu0 0.0
    %2292 = vmatprep.subr.mxu0 0.0
    %2293 = vmatpush1.msra.mxu0 0.0
    %2294 = vmatprep.subr.mxu0 0.0
    %2295 = vmatpush1.msra.mxu0 0.0
    %2296 = vmatprep.subr.mxu0 0.0
    %2297 = vmatpush1.msra.mxu0 0.0
    %2298 = vmatprep.subr.mxu0 0.0
    %2299 = vmatpush1.msra.mxu0 0.0
    %2300 = vmatprep.subr.mxu0 0.0
    %2301 = vmatpush1.msra.mxu0 0.0
    %2302 = vmatprep.subr.mxu0 0.0
    %2303 = vmatpush1.msra.mxu0 0.0
    %2304 = vmatprep.subr.mxu0 0.0
    %2305 = vmatpush1.msra.mxu0 0.0
    %2306 = vmatprep.subr.mxu0 0.0
    %2307 = vmatpush1.msra.mxu0 0.0
    %2308 = vmatprep.subr.mxu0 0.0
    %2309 = vmatpush1.msra.mxu0 0.0
    %2310 = vmatprep.subr.mxu0 0.0
    %2311 = vmatpush1.msra.mxu0 0.0
    %2312 = vmatprep.subr.mxu0 0.0
    %2313 = vmatpush1.msra.mxu0 0.0
    %2314 = vmatprep.subr.mxu0 0.0
    %2315 = vmatpush1.msra.mxu0 %v1985
    %2316 = vmatprep.subr.mxu0 0.0
    %2317 = vmatpush2.msra.mxu0 0.0
    %2318 = vmatprep.subr.mxu0 0.0
    %2319 = vmatpush2.msra.mxu0 0.0
    %2320 = vmatprep.subr.mxu0 0.0
    %2321 = vmatpush2.msra.mxu0 0.0
    %2322 = vmatprep.subr.mxu0 0.0
    %2323 = vmatpush2.msra.mxu0 0.0
    %2324 = vmatprep.subr.mxu0 0.0
    %2325 = vmatpush2.msra.mxu0 0.0
    %2326 = vmatprep.subr.mxu0 0.0
    %2327 = vmatpush2.msra.mxu0 0.0
    %2328 = vmatprep.subr.mxu0 0.0
    %2329 = vmatpush2.msra.mxu0 0.0
    %2330 = vmatprep.subr.mxu0 0.0
    %2331 = vmatpush2.msra.mxu0 0.0
    %2332 = vmatprep.subr.mxu0 0.0
    %2333 = vmatpush2.msra.mxu0 0.0
    %2334 = vmatprep.subr.mxu0 0.0
    %2335 = vmatpush2.msra.mxu0 0.0
    %2336 = vmatprep.subr.mxu0 0.0
    %2337 = vmatpush2.msra.mxu0 0.0
    %2338 = vmatprep.subr.mxu0 0.0
    %2339 = vmatpush2.msra.mxu0 0.0
    %2340 = vmatprep.subr.mxu0 0.0
    %2341 = vmatpush2.msra.mxu0 0.0
    %2342 = vmatprep.subr.mxu0 0.0
    %2343 = vmatpush2.msra.mxu0 0.0
    %2344 = vmatprep.subr.mxu0 0.0
    %2345 = vmatpush2.msra.mxu0 0.0
    %2346 = vmatprep.subr.mxu0 0.0
    %2347 = vmatpush2.msra.mxu0 0.0
    %2348 = vmatprep.mubr.f32.mxu0 0.0
    %2349 = vmatmul.mubr.f32.gmra.mxu0 %v2282
    %v2350 = vpop.f32.mrf.mxu0
    %v2351 = vadd.f32 0.0, %v2350
    %v2352 = vpop.f32.mrf.mxu0
    %2353 = vdwg.mxu0
    %v2355 = vsel %vm635, %v1830, 0
    %2357 = vmatprep.subr.mxu0 0.0
    %2358 = vmatpush1.msra.mxu0 0.0
    %2359 = vmatprep.subr.mxu0 0.0
    %2360 = vmatpush1.msra.mxu0 0.0
    %2361 = vmatprep.subr.mxu0 0.0
    %2362 = vmatpush1.msra.mxu0 0.0
    %2363 = vmatprep.subr.mxu0 0.0
    %2364 = vmatpush1.msra.mxu0 0.0
    %2365 = vmatprep.subr.mxu0 0.0
    %2366 = vmatpush1.msra.mxu0 0.0
    %2367 = vmatprep.subr.mxu0 0.0
    %2368 = vmatpush1.msra.mxu0 0.0
    %2369 = vmatprep.subr.mxu0 0.0
    %2370 = vmatpush1.msra.mxu0 0.0
    %2371 = vmatprep.subr.mxu0 0.0
    %2372 = vmatpush1.msra.mxu0 0.0
    %2373 = vmatprep.subr.mxu0 0.0
    %2374 = vmatpush1.msra.mxu0 0.0
    %2375 = vmatprep.subr.mxu0 0.0
    %2376 = vmatpush1.msra.mxu0 0.0
    %2377 = vmatprep.subr.mxu0 0.0
    %2378 = vmatpush1.msra.mxu0 0.0
    %2379 = vmatprep.subr.mxu0 0.0
    %2380 = vmatpush1.msra.mxu0 0.0
    %2381 = vmatprep.subr.mxu0 0.0
    %2382 = vmatpush1.msra.mxu0 0.0
    %2383 = vmatprep.subr.mxu0 0.0
    %2384 = vmatpush1.msra.mxu0 0.0
    %2385 = vmatprep.subr.mxu0 0.0
    %2386 = vmatpush1.msra.mxu0 0.0
    %2387 = vmatprep.subr.mxu0 0.0
    %2388 = vmatpush1.msra.mxu0 %v1986
    %2389 = vmatprep.subr.mxu0 0.0
    %2390 = vmatpush2.msra.mxu0 0.0
    %2391 = vmatprep.subr.mxu0 0.0
    %2392 = vmatpush2.msra.mxu0 0.0
    %2393 = vmatprep.subr.mxu0 0.0
    %2394 = vmatpush2.msra.mxu0 0.0
    %2395 = vmatprep.subr.mxu0 0.0
    %2396 = vmatpush2.msra.mxu0 0.0
    %2397 = vmatprep.subr.mxu0 0.0
    %2398 = vmatpush2.msra.mxu0 0.0
    %2399 = vmatprep.subr.mxu0 0.0
    %2400 = vmatpush2.msra.mxu0 0.0
    %2401 = vmatprep.subr.mxu0 0.0
    %2402 = vmatpush2.msra.mxu0 0.0
    %2403 = vmatprep.subr.mxu0 0.0
    %2404 = vmatpush2.msra.mxu0 0.0
    %2405 = vmatprep.subr.mxu0 0.0
    %2406 = vmatpush2.msra.mxu0 0.0
    %2407 = vmatprep.subr.mxu0 0.0
    %2408 = vmatpush2.msra.mxu0 0.0
    %2409 = vmatprep.subr.mxu0 0.0
    %2410 = vmatpush2.msra.mxu0 0.0
    %2411 = vmatprep.subr.mxu0 0.0
    %2412 = vmatpush2.msra.mxu0 0.0
    %2413 = vmatprep.subr.mxu0 0.0
    %2414 = vmatpush2.msra.mxu0 0.0
    %2415 = vmatprep.subr.mxu0 0.0
    %2416 = vmatpush2.msra.mxu0 0.0
    %2417 = vmatprep.subr.mxu0 0.0
    %2418 = vmatpush2.msra.mxu0 0.0
    %2419 = vmatprep.subr.mxu0 0.0
    %2420 = vmatpush2.msra.mxu0 0.0
    %2421 = vmatprep.mubr.f32.mxu0 0.0
    %2422 = vmatmul.mubr.f32.gmra.mxu0 %v2355
    %v2423 = vpop.f32.mrf.mxu0
    %v2424 = vadd.f32 0.0, %v2423
    %v2425 = vpop.f32.mrf.mxu0
    %2426 = vdwg.mxu0
    %v2428 = vsel %vm635, %v1906, 0
    %2430 = vmatprep.subr.mxu0 0.0
    %2431 = vmatpush1.msra.mxu0 0.0
    %2432 = vmatprep.subr.mxu0 0.0
    %2433 = vmatpush1.msra.mxu0 0.0
    %2434 = vmatprep.subr.mxu0 0.0
    %2435 = vmatpush1.msra.mxu0 0.0
    %2436 = vmatprep.subr.mxu0 0.0
    %2437 = vmatpush1.msra.mxu0 0.0
    %2438 = vmatprep.subr.mxu0 0.0
    %2439 = vmatpush1.msra.mxu0 0.0
    %2440 = vmatprep.subr.mxu0 0.0
    %2441 = vmatpush1.msra.mxu0 0.0
    %2442 = vmatprep.subr.mxu0 0.0
    %2443 = vmatpush1.msra.mxu0 0.0
    %2444 = vmatprep.subr.mxu0 0.0
    %2445 = vmatpush1.msra.mxu0 0.0
    %2446 = vmatprep.subr.mxu0 0.0
    %2447 = vmatpush1.msra.mxu0 0.0
    %2448 = vmatprep.subr.mxu0 0.0
    %2449 = vmatpush1.msra.mxu0 0.0
    %2450 = vmatprep.subr.mxu0 0.0
    %2451 = vmatpush1.msra.mxu0 0.0
    %2452 = vmatprep.subr.mxu0 0.0
    %2453 = vmatpush1.msra.mxu0 0.0
    %2454 = vmatprep.subr.mxu0 0.0
    %2455 = vmatpush1.msra.mxu0 0.0
    %2456 = vmatprep.subr.mxu0 0.0
    %2457 = vmatpush1.msra.mxu0 0.0
    %2458 = vmatprep.subr.mxu0 0.0
    %2459 = vmatpush1.msra.mxu0 0.0
    %2460 = vmatprep.subr.mxu0 0.0
    %2461 = vmatpush1.msra.mxu0 %v1987
    %2462 = vmatprep.subr.mxu0 0.0
    %2463 = vmatpush2.msra.mxu0 0.0
    %2464 = vmatprep.subr.mxu0 0.0
    %2465 = vmatpush2.msra.mxu0 0.0
    %2466 = vmatprep.subr.mxu0 0.0
    %2467 = vmatpush2.msra.mxu0 0.0
    %2468 = vmatprep.subr.mxu0 0.0
    %2469 = vmatpush2.msra.mxu0 0.0
    %2470 = vmatprep.subr.mxu0 0.0
    %2471 = vmatpush2.msra.mxu0 0.0
    %2472 = vmatprep.subr.mxu0 0.0
    %2473 = vmatpush2.msra.mxu0 0.0
    %2474 = vmatprep.subr.mxu0 0.0
    %2475 = vmatpush2.msra.mxu0 0.0
    %2476 = vmatprep.subr.mxu0 0.0
    %2477 = vmatpush2.msra.mxu0 0.0
    %2478 = vmatprep.subr.mxu0 0.0
    %2479 = vmatpush2.msra.mxu0 0.0
    %2480 = vmatprep.subr.mxu0 0.0
    %2481 = vmatpush2.msra.mxu0 0.0
    %2482 = vmatprep.subr.mxu0 0.0
    %2483 = vmatpush2.msra.mxu0 0.0
    %2484 = vmatprep.subr.mxu0 0.0
    %2485 = vmatpush2.msra.mxu0 0.0
    %2486 = vmatprep.subr.mxu0 0.0
    %2487 = vmatpush2.msra.mxu0 0.0
    %2488 = vmatprep.subr.mxu0 0.0
    %2489 = vmatpush2.msra.mxu0 0.0
    %2490 = vmatprep.subr.mxu0 0.0
    %2491 = vmatpush2.msra.mxu0 0.0
    %2492 = vmatprep.subr.mxu0 0.0
    %2493 = vmatpush2.msra.mxu0 0.0
    %2494 = vmatprep.mubr.f32.mxu0 0.0
    %2495 = vmatmul.mubr.f32.gmra.mxu0 %v2428
    %v2496 = vpop.f32.mrf.mxu0
    %v2497 = vadd.f32 0.0, %v2496
    %v2498 = vpop.f32.mrf.mxu0
    %2499 = vdwg.mxu0
    %v2501 = vsel %vm635, %v1982, 0
    %2503 = vmatprep.subr.mxu0 0.0
    %2504 = vmatpush1.msra.mxu0 0.0
    %2505 = vmatprep.subr.mxu0 0.0
    %2506 = vmatpush1.msra.mxu0 0.0
    %2507 = vmatprep.subr.mxu0 0.0
    %2508 = vmatpush1.msra.mxu0 0.0
    %2509 = vmatprep.subr.mxu0 0.0
    %2510 = vmatpush1.msra.mxu0 0.0
    %2511 = vmatprep.subr.mxu0 0.0
    %2512 = vmatpush1.msra.mxu0 0.0
    %2513 = vmatprep.subr.mxu0 0.0
    %2514 = vmatpush1.msra.mxu0 0.0
    %2515 = vmatprep.subr.mxu0 0.0
    %2516 = vmatpush1.msra.mxu0 0.0
    %2517 = vmatprep.subr.mxu0 0.0
    %2518 = vmatpush1.msra.mxu0 0.0
    %2519 = vmatprep.subr.mxu0 0.0
    %2520 = vmatpush1.msra.mxu0 0.0
    %2521 = vmatprep.subr.mxu0 0.0
    %2522 = vmatpush1.msra.mxu0 0.0
    %2523 = vmatprep.subr.mxu0 0.0
    %2524 = vmatpush1.msra.mxu0 0.0
    %2525 = vmatprep.subr.mxu0 0.0
    %2526 = vmatpush1.msra.mxu0 0.0
    %2527 = vmatprep.subr.mxu0 0.0
    %2528 = vmatpush1.msra.mxu0 0.0
    %2529 = vmatprep.subr.mxu0 0.0
    %2530 = vmatpush1.msra.mxu0 0.0
    %2531 = vmatprep.subr.mxu0 0.0
    %2532 = vmatpush1.msra.mxu0 0.0
    %2533 = vmatprep.subr.mxu0 0.0
    %2534 = vmatpush1.msra.mxu0 %v1988
    %2535 = vmatprep.subr.mxu0 0.0
    %2536 = vmatpush2.msra.mxu0 0.0
    %2537 = vmatprep.subr.mxu0 0.0
    %2538 = vmatpush2.msra.mxu0 0.0
    %2539 = vmatprep.subr.mxu0 0.0
    %2540 = vmatpush2.msra.mxu0 0.0
    %2541 = vmatprep.subr.mxu0 0.0
    %2542 = vmatpush2.msra.mxu0 0.0
    %2543 = vmatprep.subr.mxu0 0.0
    %2544 = vmatpush2.msra.mxu0 0.0
    %2545 = vmatprep.subr.mxu0 0.0
    %2546 = vmatpush2.msra.mxu0 0.0
    %2547 = vmatprep.subr.mxu0 0.0
    %2548 = vmatpush2.msra.mxu0 0.0
    %2549 = vmatprep.subr.mxu0 0.0
    %2550 = vmatpush2.msra.mxu0 0.0
    %2551 = vmatprep.subr.mxu0 0.0
    %2552 = vmatpush2.msra.mxu0 0.0
    %2553 = vmatprep.subr.mxu0 0.0
    %2554 = vmatpush2.msra.mxu0 0.0
    %2555 = vmatprep.subr.mxu0 0.0
    %2556 = vmatpush2.msra.mxu0 0.0
    %2557 = vmatprep.subr.mxu0 0.0
    %2558 = vmatpush2.msra.mxu0 0.0
    %2559 = vmatprep.subr.mxu0 0.0
    %2560 = vmatpush2.msra.mxu0 0.0
    %2561 = vmatprep.subr.mxu0 0.0
    %2562 = vmatpush2.msra.mxu0 0.0
    %2563 = vmatprep.subr.mxu0 0.0
    %2564 = vmatpush2.msra.mxu0 0.0
    %2565 = vmatprep.subr.mxu0 0.0
    %2566 = vmatpush2.msra.mxu0 0.0
    %2567 = vmatprep.mubr.f32.mxu0 0.0
    %2568 = vmatmul.mubr.f32.gmra.mxu0 %v2501
    %v2569 = vpop.f32.mrf.mxu0
    %v2570 = vadd.f32 0.0, %v2569
    %v2571 = vpop.f32.mrf.mxu0
    %2572 = vdwg.mxu0
    %v2573 = vsel %vm48, %v2059, 0.0
    %v2574 = vsel %vm48, %v2132, 0.0
    %v2575 = vadd.f32 %v2573, %v2574
    %v2576 = vsel %vm48, %v2205, 0.0
    %v2577 = vadd.f32 %v2575, %v2576
    %v2578 = vsel %vm48, %v2278, 0.0
    %v2579 = vadd.f32 %v2577, %v2578
    %v2580 = vsel %vm48, %v2351, 0.0
    %v2581 = vsel %vm48, %v2424, 0.0
    %v2582 = vadd.f32 %v2580, %v2581
    %v2583 = vsel %vm48, %v2497, 0.0
    %v2584 = vadd.f32 %v2582, %v2583
    %v2585 = vsel %vm48, %v2570, 0.0
    %v2586 = vadd.f32 %v2584, %v2585
    %v2587 = vld [vmem:[%s6] sm:$0xf]
    %v2588 = vadd.f32 %v2579, %v30
    %v2589 = vadd.f32 %v2586, %v31
    %v2590 = vsel %vm48, %v2588, 0.0
    %2591 = vadd.xlane.f32.xlu0 %v2590
    %v2592 = vpop.xlane.xlu0 %2591
    %v2593 = vsel %vm48, %v2589, 0.0
    %2594 = vadd.xlane.f32.xlu0 %v2593
    %v2595 = vpop.xlane.xlu0 %2594
    %v2596 = vrcp.pop 32.0
    %v2597 = vmul.f32 %v2592, %v2596
    %v2598 = vmul.f32 %v2595, %v2596
    %v2599 = vsub.f32 %v2588, %v2597
    %v2600 = vsub.f32 %v2589, %v2598
    %v2601 = vmul.f32 %v2599, %v2599
    %v2602 = vmul.f32 %v2600, %v2600
    %v2603 = vsel %vm48, %v2601, 0.0
    %2604 = vadd.xlane.f32.xlu0 %v2603
    %v2605 = vpop.xlane.xlu0 %2604
    %v2606 = vsel %vm48, %v2602, 0.0
    %2607 = vadd.xlane.f32.xlu0 %v2606
    %v2608 = vpop.xlane.xlu0 %2607
    %v2609 = vmul.f32 %v2605, %v2596
    %v2610 = vmul.f32 %v2608, %v2596
    %v2611 = vadd.f32 %v2609, 1e-05
    %v2612 = vadd.f32 %v2610, 1e-05
    %v2613 = vrsqrt.pop %v2611
    %v2614 = vrsqrt.pop %v2612
    %v2615 = vmul.f32 %v2599, %v2613
    %v2616 = vmul.f32 %v2600, %v2614
    %v2617 = vlaneseq
    %v2618 = vshrl.u32 %v2617, 7
    %v2619 = vsub.s32 0, %v2618
    %v2620 = vrot.slane %v2587, %v2619
    %v2621 = vmul.f32 %v2615, %v2620
    %v2622 = vmul.f32 %v2616, %v2620
    %v2623 = vlaneseq
    %v2624 = vshrl.u32 %v2623, 7
    %v2625 = vsub.s32 1, %v2624
    %v2626 = vrot.slane %v2587, %v2625
    %v2627 = vadd.f32 %v2621, %v2626
    %v2628 = vadd.f32 %v2622, %v2626
    %v2629 = vld [vmem:[%s4] sm:$0xff]
    %v2630 = vld [vmem:[%s4 + $0x8] sm:$0xff]
    %v2631 = vld [vmem:[%s4 + $0x10] sm:$0xff]
    %v2632 = vld [vmem:[%s4 + $0x18] sm:$0xff]
    %v2634 = vsel %vm48, %v2627, 0
    %v2637 = vsel %vm48, %v2628, 0
    %2639 = vmatprep.subr.mxu0 0.0
    %2640 = vmatpush1.msra.mxu0 0.0
    %2641 = vmatprep.subr.mxu0 0.0
    %2642 = vmatpush1.msra.mxu0 0.0
    %2643 = vmatprep.subr.mxu0 0.0
    %2644 = vmatpush1.msra.mxu0 0.0
    %2645 = vmatprep.subr.mxu0 0.0
    %2646 = vmatpush1.msra.mxu0 0.0
    %2647 = vmatprep.subr.mxu0 0.0
    %2648 = vmatpush1.msra.mxu0 0.0
    %2649 = vmatprep.subr.mxu0 0.0
    %2650 = vmatpush1.msra.mxu0 0.0
    %2651 = vmatprep.subr.mxu0 0.0
    %2652 = vmatpush1.msra.mxu0 0.0
    %2653 = vmatprep.subr.mxu0 0.0
    %2654 = vmatpush1.msra.mxu0 0.0
    %2655 = vmatprep.subr.mxu0 0.0
    %2656 = vmatpush1.msra.mxu0 0.0
    %2657 = vmatprep.subr.mxu0 0.0
    %2658 = vmatpush1.msra.mxu0 0.0
    %2659 = vmatprep.subr.mxu0 0.0
    %2660 = vmatpush1.msra.mxu0 0.0
    %2661 = vmatprep.subr.mxu0 0.0
    %2662 = vmatpush1.msra.mxu0 0.0
    %2663 = vmatprep.subr.mxu0 0.0
    %2664 = vmatpush1.msra.mxu0 %v2632
    %2665 = vmatprep.subr.mxu0 0.0
    %2666 = vmatpush1.msra.mxu0 %v2631
    %2667 = vmatprep.subr.mxu0 0.0
    %2668 = vmatpush1.msra.mxu0 %v2630
    %2669 = vmatprep.subr.mxu0 0.0
    %2670 = vmatpush1.msra.mxu0 %v2629
    %2671 = vmatprep.subr.mxu0 0.0
    %2672 = vmatpush2.msra.mxu0 0.0
    %2673 = vmatprep.subr.mxu0 0.0
    %2674 = vmatpush2.msra.mxu0 0.0
    %2675 = vmatprep.subr.mxu0 0.0
    %2676 = vmatpush2.msra.mxu0 0.0
    %2677 = vmatprep.subr.mxu0 0.0
    %2678 = vmatpush2.msra.mxu0 0.0
    %2679 = vmatprep.subr.mxu0 0.0
    %2680 = vmatpush2.msra.mxu0 0.0
    %2681 = vmatprep.subr.mxu0 0.0
    %2682 = vmatpush2.msra.mxu0 0.0
    %2683 = vmatprep.subr.mxu0 0.0
    %2684 = vmatpush2.msra.mxu0 0.0
    %2685 = vmatprep.subr.mxu0 0.0
    %2686 = vmatpush2.msra.mxu0 0.0
    %2687 = vmatprep.subr.mxu0 0.0
    %2688 = vmatpush2.msra.mxu0 0.0
    %2689 = vmatprep.subr.mxu0 0.0
    %2690 = vmatpush2.msra.mxu0 0.0
    %2691 = vmatprep.subr.mxu0 0.0
    %2692 = vmatpush2.msra.mxu0 0.0
    %2693 = vmatprep.subr.mxu0 0.0
    %2694 = vmatpush2.msra.mxu0 0.0
    %2695 = vmatprep.subr.mxu0 0.0
    %2696 = vmatpush2.msra.mxu0 0.0
    %2697 = vmatprep.subr.mxu0 0.0
    %2698 = vmatpush2.msra.mxu0 0.0
    %2699 = vmatprep.subr.mxu0 0.0
    %2700 = vmatpush2.msra.mxu0 0.0
    %2701 = vmatprep.subr.mxu0 0.0
    %2702 = vmatpush2.msra.mxu0 0.0
    %2703 = vmatprep.mubr.f32.mxu0 0.0
    %2704 = vmatmul.mubr.f32.gmra.mxu0 %v2634
    %v2705 = vpop.f32.mrf.mxu0
    %v2706 = vadd.f32 0.0, %v2705
    %v2707 = vpop.f32.mrf.mxu0
    %2708 = vmatprep.mubr.f32.mxu0 0.0
    %2709 = vmatmul.mubr.f32.gmra.mxu0 %v2637
    %v2710 = vpop.f32.mrf.mxu0
    %v2711 = vadd.f32 0.0, %v2710
    %v2712 = vpop.f32.mrf.mxu0
    %2713 = vdwg.mxu0
    %v2714 = vmax.f32 %v2706, 0.0
    %v2715 = vmax.f32 %v2711, 0.0
    %v2716 = vld [vmem:[%s5] sm:$0xff]
    %v2717 = vld [vmem:[%s5 + $0x8] sm:$0xff]
    %v2718 = vld [vmem:[%s5 + $0x10] sm:$0xff]
    %v2719 = vld [vmem:[%s5 + $0x18] sm:$0xff]
    %v2720 = vld [vmem:[%s5 + $0x20] sm:$0xff]
    %v2721 = vld [vmem:[%s5 + $0x28] sm:$0xff]
    %v2722 = vld [vmem:[%s5 + $0x30] sm:$0xff]
    %v2723 = vld [vmem:[%s5 + $0x38] sm:$0xff]
    %vm2724 = vcmask 523264
    %v2726 = vsel %vm2724, %v2714, 0
    %v2729 = vsel %vm2724, %v2715, 0
    %2731 = vmatprep.subr.mxu0 0.0
    %2732 = vmatpush1.msra.mxu0 0.0
    %2733 = vmatprep.subr.mxu0 0.0
    %2734 = vmatpush1.msra.mxu0 0.0
    %2735 = vmatprep.subr.mxu0 0.0
    %2736 = vmatpush1.msra.mxu0 0.0
    %2737 = vmatprep.subr.mxu0 0.0
    %2738 = vmatpush1.msra.mxu0 0.0
    %2739 = vmatprep.subr.mxu0 0.0
    %2740 = vmatpush1.msra.mxu0 0.0
    %2741 = vmatprep.subr.mxu0 0.0
    %2742 = vmatpush1.msra.mxu0 0.0
    %2743 = vmatprep.subr.mxu0 0.0
    %2744 = vmatpush1.msra.mxu0 0.0
    %2745 = vmatprep.subr.mxu0 0.0
    %2746 = vmatpush1.msra.mxu0 0.0
    %2747 = vmatprep.subr.mxu0 0.0
    %2748 = vmatpush1.msra.mxu0 %v2723
    %2749 = vmatprep.subr.mxu0 0.0
    %2750 = vmatpush1.msra.mxu0 %v2722
    %2751 = vmatprep.subr.mxu0 0.0
    %2752 = vmatpush1.msra.mxu0 %v2721
    %2753 = vmatprep.subr.mxu0 0.0
    %2754 = vmatpush1.msra.mxu0 %v2720
    %2755 = vmatprep.subr.mxu0 0.0
    %2756 = vmatpush1.msra.mxu0 %v2719
    %2757 = vmatprep.subr.mxu0 0.0
    %2758 = vmatpush1.msra.mxu0 %v2718
    %2759 = vmatprep.subr.mxu0 0.0
    %2760 = vmatpush1.msra.mxu0 %v2717
    %2761 = vmatprep.subr.mxu0 0.0
    %2762 = vmatpush1.msra.mxu0 %v2716
    %2763 = vmatprep.subr.mxu0 0.0
    %2764 = vmatpush2.msra.mxu0 0.0
    %2765 = vmatprep.subr.mxu0 0.0
    %2766 = vmatpush2.msra.mxu0 0.0
    %2767 = vmatprep.subr.mxu0 0.0
    %2768 = vmatpush2.msra.mxu0 0.0
    %2769 = vmatprep.subr.mxu0 0.0
    %2770 = vmatpush2.msra.mxu0 0.0
    %2771 = vmatprep.subr.mxu0 0.0
    %2772 = vmatpush2.msra.mxu0 0.0
    %2773 = vmatprep.subr.mxu0 0.0
    %2774 = vmatpush2.msra.mxu0 0.0
    %2775 = vmatprep.subr.mxu0 0.0
    %2776 = vmatpush2.msra.mxu0 0.0
    %2777 = vmatprep.subr.mxu0 0.0
    %2778 = vmatpush2.msra.mxu0 0.0
    %2779 = vmatprep.subr.mxu0 0.0
    %2780 = vmatpush2.msra.mxu0 0.0
    %2781 = vmatprep.subr.mxu0 0.0
    %2782 = vmatpush2.msra.mxu0 0.0
    %2783 = vmatprep.subr.mxu0 0.0
    %2784 = vmatpush2.msra.mxu0 0.0
    %2785 = vmatprep.subr.mxu0 0.0
    %2786 = vmatpush2.msra.mxu0 0.0
    %2787 = vmatprep.subr.mxu0 0.0
    %2788 = vmatpush2.msra.mxu0 0.0
    %2789 = vmatprep.subr.mxu0 0.0
    %2790 = vmatpush2.msra.mxu0 0.0
    %2791 = vmatprep.subr.mxu0 0.0
    %2792 = vmatpush2.msra.mxu0 0.0
    %2793 = vmatprep.subr.mxu0 0.0
    %2794 = vmatpush2.msra.mxu0 0.0
    %2795 = vmatprep.mubr.f32.mxu0 0.0
    %2796 = vmatmul.mubr.f32.gmra.mxu0 %v2726
    %v2797 = vpop.f32.mrf.mxu0
    %v2798 = vadd.f32 %v2627, %v2797
    %v2799 = vpop.f32.mrf.mxu0
    %2800 = vmatprep.mubr.f32.mxu0 0.0
    %2801 = vmatmul.mubr.f32.gmra.mxu0 %v2729
    %v2802 = vpop.f32.mrf.mxu0
    %v2803 = vadd.f32 %v2628, %v2802
    %v2804 = vpop.f32.mrf.mxu0
    %2805 = vdwg.mxu0
    %v2806 = vsel %vm48, %v2798, 0.0
    %2807 = vadd.xlane.f32.xlu0 %v2806
    %v2808 = vpop.xlane.xlu0 %2807
    %v2809 = vsel %vm48, %v2803, 0.0
    %2810 = vadd.xlane.f32.xlu0 %v2809
    %v2811 = vpop.xlane.xlu0 %2810
    %v2812 = vmul.f32 %v2808, %v2596
    %v2813 = vmul.f32 %v2811, %v2596
    %v2814 = vsub.f32 %v2798, %v2812
    %v2815 = vsub.f32 %v2803, %v2813
    %v2816 = vmul.f32 %v2814, %v2814
    %v2817 = vmul.f32 %v2815, %v2815
    %v2818 = vsel %vm48, %v2816, 0.0
    %2819 = vadd.xlane.f32.xlu0 %v2818
    %v2820 = vpop.xlane.xlu0 %2819
    %v2821 = vsel %vm48, %v2817, 0.0
    %2822 = vadd.xlane.f32.xlu0 %v2821
    %v2823 = vpop.xlane.xlu0 %2822
    %v2824 = vmul.f32 %v2820, %v2596
    %v2825 = vmul.f32 %v2823, %v2596
    %v2826 = vadd.f32 %v2824, 1e-05
    %v2827 = vadd.f32 %v2825, 1e-05
    %v2828 = vrsqrt.pop %v2826
    %v2829 = vrsqrt.pop %v2827
    %v2830 = vmul.f32 %v2814, %v2828
    %v2831 = vmul.f32 %v2815, %v2829
    %v2832 = vlaneseq
    %v2833 = vshrl.u32 %v2832, 7
    %v2834 = vsub.s32 2, %v2833
    %v2835 = vrot.slane %v2587, %v2834
    %v2836 = vmul.f32 %v2830, %v2835
    %v2837 = vmul.f32 %v2831, %v2835
    %v2838 = vlaneseq
    %v2839 = vshrl.u32 %v2838, 7
    %v2840 = vsub.s32 3, %v2839
    %v2841 = vrot.slane %v2587, %v2840
    %v2842 = vadd.f32 %v2836, %v2841
    %v2843 = vadd.f32 %v2837, %v2841
    %2844 = vst.msk [vmem:[#allocation2] sm:$0xff] %vm48, %v2842
    %2845 = vst.msk [vmem:[#allocation2 + $0x8] sm:$0xff] %vm48, %v2843
    // Predicated region
    $region30: #{encoder_layer_if_forward.1} parent=1 // pred_check
      _
    $region31: #{encoder_layer_if_forward.1} parent=1 // pred_check_branch
      %2847 = sbr.rel (0) target = $region33
    $region32: #{encoder_layer_if_forward.1} parent=1 // pred_region
      %s2849 = ssub.s32 256, 256
      %2850 = vsyncadd [#allocation3], %s2849
      %s2851 = sshll.u32 [#allocation2], 4
      %s2852 = int_to_ptr.vmem [resolvable:$true] %s2851
      %2857 = dma.vmem_to_hbm [thread:$0]  %s2852, 256, %s7, [#allocation3], 128, 128, 8
    $region33: #{encoder_layer_if_forward.1} parent=1 // pred_fallthru
      _
    // Predicated region
    $region34: #{encoder_layer_if_forward.1} parent=1 // pred_check
      _
    $region35: #{encoder_layer_if_forward.1} parent=1 // pred_check_branch
      %2859 = sbr.rel (0) target = $region37
    $region36: #{encoder_layer_if_forward.1} parent=1 // pred_region
      %s2861 = ssub.s32 1024, 1024
      %2862 = vsyncadd [#allocation5], %s2861
      %s2863 = sshll.u32 [#allocation4], 4
      %s2864 = int_to_ptr.vmem [resolvable:$true] %s2863
      %2869 = dma.vmem_to_hbm [thread:$0]  %s2864, 1024, %s8, [#allocation5], 128, 128, 8
    $region37: #{encoder_layer_if_forward.1} parent=1 // pred_fallthru
      _
    // Predicated region
    $region38: #{encoder_layer_if_forward.1} parent=1 // pred_check
      _
    $region39: #{encoder_layer_if_forward.1} parent=1 // pred_check_branch
      %2871 = sbr.rel (0) target = $region41
    $region40: #{encoder_layer_if_forward.1} parent=1 // pred_region
      %2872 = dma.done [#allocation3], 256
    $region41: #{encoder_layer_if_forward.1} parent=1 // pred_fallthru
      _
    // Predicated region
    $region42: #{encoder_layer_if_forward.1} parent=1 // pred_check
      _
    $region43: #{encoder_layer_if_forward.1} parent=1 // pred_check_branch
      %2874 = sbr.rel (0) target = $region45
    $region44: #{encoder_layer_if_forward.1} parent=1 // pred_region
      %2875 = dma.done [#allocation5], 1024
    $region45: #{encoder_layer_if_forward.1} parent=1 // pred_fallthru
      _
    %2876 = vsyncpa [#allocation3], 1
    %2877 = vsyncpa [#allocation5], 1

</llo_original>
